<compile_context>
chip_gen: v7x
topology: tpu7x:2x2x1
jax: 0.10.0
libtpu: 0.0.40
codegen_flags: <defaults>
</compile_context>

<pallas_src>
import math

import jax
import jax.numpy as jnp
from jax import lax
from jax.experimental import pallas as pl
from jax.experimental.pallas import tpu as pltpu


def _vmem_limit_bytes(frac=0.75, hard_cap=96 * 1024 * 1024):
    """Per-generation VMEM budget: ~3/4 of physical VMEM, capped at 96 MiB.

    v5e/v6e (128 MiB) -> 96 MiB, v7x (64 MiB per TC) -> 48 MiB. Falls back to
    a conservative 48 MiB if the hardware query is unavailable.
    """
    try:
        cap = int(pltpu.get_tpu_info().vmem_capacity_bytes)
    except Exception:  # pragma: no cover - defensive fallback
        cap = 64 * 1024 * 1024
    return int(min(hard_cap, frac * cap))


# --------------------------------------------------------------------------
# Kernel 1: fused [Conv1d(k=5)+foldedBN+ReLU] x3  +  LSTM input projection
#   per batch element (grid over B, "parallel").
# --------------------------------------------------------------------------
def encoder_conv_gates_kernel(x_ref, w_ref, shift_ref, wih_ref, b_ref,
                              out_ref, buf_ref):
    # x_ref:     (1, T, C)     f32   input activations (channels-last)
    # w_ref:     (3, 5, C, C)  bf16  conv weights (k, cin, cout), BN folded in
    # shift_ref: (3, 1, C)     f32   folded conv-bias + BN shift
    # wih_ref:   (C, 8H)       bf16  [Wih_fwd | Wih_bwd]
    # b_ref:     (1, 8H)       f32   [b_ih+b_hh fwd | b_ih+b_hh bwd]
    # out_ref:   (T, 8H)       bf16  precomputed LSTM input gates (lane-dense)
    # buf_ref:   (T+16, C)     f32   VMEM scratch; activation at rows [8, 8+T)
    T = x_ref.shape[1]
    C = x_ref.shape[2]

    # Zero only the halo region (aligned 8-row stores), not the whole buffer.
    zeros8 = jnp.zeros((8, C), jnp.float32)
    buf_ref[0:8, :] = zeros8
    buf_ref[T + 8:T + 16, :] = zeros8
    buf_ref[8:T + 8, :] = x_ref[0]                  # 8-row-aligned placement

    y = None
    for l in range(3):                              # static unroll, 3 layers
        # 5 shifted matmuls accumulated in f32: no im2col temp / concat copies.
        acc = jnp.zeros((T, C), jnp.float32)
        for k in range(5):
            xk = buf_ref[6 + k:6 + k + T, :].astype(jnp.bfloat16)
            acc = acc + jnp.dot(xk, w_ref[l, k],
                                preferred_element_type=jnp.float32)
        y = jnp.maximum(acc + shift_ref[l], 0.0)    # folded bias/BN + ReLU
        buf_ref[8:T + 8, :] = y                     # halo rows stay zero
        # TODO(synk): dropout(p=0.5) omitted -> eval-mode (identity) semantics.

    # Hoisted LSTM input-to-hidden projection for both directions (+ biases).
    gates = jnp.dot(y.astype(jnp.bfloat16), wih_ref[...],
                    preferred_element_type=jnp.float32) + b_ref[...]
    out_ref[...] = gates.astype(out_ref.dtype)      # bf16 gates -> half HBM


def conv_stack_and_gates(x_btc, w_all, shift_all, wih_cat, b_cat):
    B, T, C = x_btc.shape
    G = wih_cat.shape[1]                            # 8H = 4C
    flops = int(B * (3 * 2 * T * (5 * C) * C + 2 * T * C * G))
    bytes_accessed = int(x_btc.size * 4 + w_all.size * 2 + shift_all.size * 4
                         + wih_cat.size * 2 + b_cat.size * 4 + B * T * G * 2)
    gates_flat = pl.pallas_call(
        encoder_conv_gates_kernel,
        out_shape=jax.ShapeDtypeStruct((T, B * G), jnp.bfloat16),
        grid=(B,),
        in_specs=[
            pl.BlockSpec((1, T, C), lambda b: (b, 0, 0)),
            # TODO(synk): on v7x add pipeline_mode=pl.Buffered(1) to the 4
            # grid-invariant weight specs below (they never change across b).
            pl.BlockSpec((3, 5, C, C), lambda b: (0, 0, 0, 0)),
            pl.BlockSpec((3, 1, C), lambda b: (0, 0, 0)),
            pl.BlockSpec((C, G), lambda b: (0, 0)),
            pl.BlockSpec((1, G), lambda b: (0, 0)),
        ],
        # lane-dense 128*k-wide output block per batch element
        out_specs=pl.BlockSpec((T, G), lambda b: (0, b)),
        scratch_shapes=[pltpu.VMEM((T + 16, C), jnp.float32)],
        compiler_params=pltpu.CompilerParams(
            dimension_semantics=("parallel",),
            vmem_limit_bytes=_vmem_limit_bytes()),
        cost_estimate=pl.CostEstimate(flops=flops, transcendentals=0,
                                      bytes_accessed=bytes_accessed),
    )(x_btc, w_all, shift_all, wih_cat, b_cat)
    # free reshape (splits the last dim, no transpose / no data movement)
    return gates_flat.reshape(T, B, G)              # time-major gates


# --------------------------------------------------------------------------
# Kernel 2: length-masked bidirectional LSTM recurrence, gridded over batch.
#   Input gates already contain x @ Wih + biases; only the small recurrent
#   matmul + gate math runs per step. Fwd/bwd interleaved in one loop.
#   Output is written batch-first (no HBM transpose afterwards).
# --------------------------------------------------------------------------
def bilstm_kernel(gates_ref, len_ref, whh_f_ref, whh_b_ref, out_ref, scr_ref):
    # gates_ref: (T, B_TILE, 8H) bf16,  len_ref: (B_TILE, 1) int32
    # whh_*:     (H, 4H)         bf16
    # out_ref:   (B_TILE, T, 2H) batch-first output block
    # scr_ref:   (T, B_TILE, 2H) f32 VMEM (time-major accumulation)
    T, Bt, _ = gates_ref.shape
    H = whh_f_ref.shape[0]
    lens = len_ref[...]                             # (B_TILE, 1) int32

    def cell(gx, h, c, whh_ref):
        gates = gx + jnp.dot(h.astype(jnp.bfloat16), whh_ref[...],
                             preferred_element_type=jnp.float32)
        i = jax.nn.sigmoid(gates[:, 0:H])           # PyTorch order i,f,g,o
        f = jax.nn.sigmoid(gates[:, H:2 * H])
        g = jnp.tanh(gates[:, 2 * H:3 * H])
        o = jax.nn.sigmoid(gates[:, 3 * H:4 * H])
        c_new = f * c + i * g
        h_new = o * jnp.tanh(c_new)
        return h_new, c_new
    # TODO(synk): on v6e/v7x the sigmoid/tanh could run in bf16 (2x EUP);
    # kept f32 so the same kernel stays correct/fast on v5e.

    z = jnp.zeros((Bt, H), jnp.float32)

    def body(s, carry):
        h_f, c_f, h_b, c_b = carry
        t_f = s
        t_b = T - 1 - s
        g_f = gates_ref[t_f, :, 0:4 * H].astype(jnp.float32)     # bf16 -> f32
        g_b = gates_ref[t_b, :, 4 * H:8 * H].astype(jnp.float32)

        h_f_new, c_f_new = cell(g_f, h_f, c_f, whh_f_ref)
        h_b_new, c_b_new = cell(g_b, h_b, c_b, whh_b_ref)

        m_f = t_f < lens                            # (B_TILE, 1) bool
        m_b = t_b < lens
        h_f = jnp.where(m_f, h_f_new, h_f)          # freeze state past length
        c_f = jnp.where(m_f, c_f_new, c_f)
        h_b = jnp.where(m_b, h_b_new, h_b)
        c_b = jnp.where(m_b, c_b_new, c_b)

        # pad positions are zeroed, like pad_packed_sequence
        scr_ref[t_f, :, 0:H] = jnp.where(m_f, h_f_new, 0.0)
        scr_ref[t_b, :, H:2 * H] = jnp.where(m_b, h_b_new, 0.0)
        return h_f, c_f, h_b, c_b

    lax.fori_loop(0, T, body, (z, z, z, z))

    # Single batch-first writeback: the (T,Bt)->(Bt,T) layout swap happens in
    # VMEM via Bt static strided copies, so no HBM transpose is needed outside.
    for bi in range(Bt):
        out_ref[bi] = scr_ref[:, bi, :].astype(out_ref.dtype)


def bilstm(gates_tbg, lengths, whh_f, whh_b, out_dtype, b_tile=None):
    T, B, G = gates_tbg.shape
    H = G // 8
    if b_tile is None:
        # Batch tile: multiple of 8 (sublane) when possible, else full batch.
        # TODO(synk): size per generation (v7x: fit ~half of 64 MiB per TC).
        b_tile = 8 if B % 8 == 0 else B
    assert B % b_tile == 0
    lens = lengths.reshape(B, 1).astype(jnp.int32)
    flops = int(2 * 2 * T * B * H * (4 * H))
    transcendentals = int(10 * T * B * H)
    bytes_accessed = int(gates_tbg.size * 2 + B * T * 2 * H * 4
                         + (whh_f.size + whh_b.size) * 2)
    return pl.pallas_call(
        bilstm_kernel,
        out_shape=jax.ShapeDtypeStruct((B, T, 2 * H), out_dtype),
        grid=(B // b_tile,),
        in_specs=[
            pl.BlockSpec((T, b_tile, G), lambda b: (0, b, 0)),
            pl.BlockSpec((b_tile, 1), lambda b: (b, 0)),
            pl.BlockSpec((H, 4 * H), lambda b: (0, 0)),
            pl.BlockSpec((H, 4 * H), lambda b: (0, 0)),
        ],
        out_specs=pl.BlockSpec((b_tile, T, 2 * H), lambda b: (b, 0, 0)),
        scratch_shapes=[pltpu.VMEM((T, b_tile, 2 * H), jnp.float32)],
        compiler_params=pltpu.CompilerParams(
            dimension_semantics=("parallel",),
            vmem_limit_bytes=_vmem_limit_bytes()),
        cost_estimate=pl.CostEstimate(flops=flops,
                                      transcendentals=transcendentals,
                                      bytes_accessed=bytes_accessed),
    )(gates_tbg, lens, whh_f, whh_b)                # already (B, T, 2H)


# --------------------------------------------------------------------------
# Parameter construction (deterministic, mirrors PyTorch init shapes) with
# offline folding: BN scale -> conv weights (bf16), conv-bias+BN -> shift,
# LSTM Wih of both directions concatenated, biases summed.
# --------------------------------------------------------------------------
def make_params(key, C):
    H = C // 2
    eps = 1e-5
    relu_gain = math.sqrt(2.0)
    ks = iter(jax.random.split(key, 64))

    w_list, shift_list = [], []
    for _ in range(3):
        fan = C * 5
        bound = relu_gain * math.sqrt(6.0 / (fan + fan))
        # Conv1d weight: PyTorch (Cout, Cin, K); ours (K, Cin, Cout).
        w = jax.random.uniform(next(ks), (5, C, C), jnp.float32, -bound, bound)
        bbound = 1.0 / math.sqrt(C * 5)
        bias = jax.random.uniform(next(ks), (C,), jnp.float32, -bbound, bbound)
        # BatchNorm1d (eval mode) parameters & running stats.
        gamma = jax.random.uniform(next(ks), (C,), jnp.float32, 0.5, 1.5)
        beta = 0.1 * jax.random.normal(next(ks), (C,), jnp.float32)
        r_mean = 0.1 * jax.random.normal(next(ks), (C,), jnp.float32)
        r_var = jax.random.uniform(next(ks), (C,), jnp.float32, 0.5, 1.5)
        scale = gamma / jnp.sqrt(r_var + eps)
        shift = (bias - r_mean) * scale + beta
        w_list.append(w * scale[None, None, :])      # BN scale folded (k-major)
        shift_list.append(shift.reshape(1, C))
    w_all = jnp.stack(w_list).astype(jnp.bfloat16)   # (3, 5, C, C)
    shift_all = jnp.stack(shift_list)                # (3, 1, C) f32

    # Bidirectional LSTM, hidden = C//2 per direction, gate order (i,f,g,o).
    s = 1.0 / math.sqrt(H)

    def lstm_dir():
        wih = jax.random.uniform(next(ks), (C, 4 * H), jnp.float32, -s, s)
        whh = jax.random.uniform(next(ks), (H, 4 * H), jnp.float32, -s, s)
        b_ih = jax.random.uniform(next(ks), (4 * H,), jnp.float32, -s, s)
        b_hh = jax.random.uniform(next(ks), (4 * H,), jnp.float32, -s, s)
        return wih, whh, b_ih + b_hh

    wih_f, whh_f, b_f = lstm_dir()
    wih_b, whh_b, b_b = lstm_dir()
    wih_cat = jnp.concatenate([wih_f, wih_b], axis=1).astype(jnp.bfloat16)
    b_cat = jnp.concatenate([b_f, b_b]).reshape(1, 8 * H)
    return (w_all, shift_all, wih_cat, b_cat,
            whh_f.astype(jnp.bfloat16), whh_b.astype(jnp.bfloat16))


def encoder_forward(x_btc, lengths, params):
    (w_all, shift_all, wih_cat, b_cat, whh_f, whh_b) = params
    gates_tbg = conv_stack_and_gates(x_btc, w_all, shift_all, wih_cat, b_cat)
    return bilstm(gates_tbg, lengths, whh_f, whh_b, x_btc.dtype)


if __name__ == "__main__":
    B, T, C = 2, 16, 32                              # embedding_dim = 32
    key = jax.random.PRNGKey(0)
    k_x, k_p = jax.random.split(key)

    # PyTorch embedded_inputs would be (B, C, T); channels-last equivalent.
    x_btc = jax.random.normal(k_x, (B, T, C), jnp.float32)
    lengths_list = [16, 11]                          # sorted (enforce_sorted)
    lengths = jnp.array(lengths_list, jnp.int32)

    params = make_params(k_p, C)

    out = jax.jit(encoder_forward)(x_btc, lengths, params)
    out = jax.block_until_ready(out)
    max_len = max(lengths_list)
    out = out[:, :max_len, :]                        # pad_packed extent

    assert out.shape == (B, max_len, C)
    assert bool(jnp.all(jnp.isfinite(out)))
    # pad_packed semantics: outputs past each sequence length are exactly zero.
    assert bool(jnp.all(out[1, lengths_list[1]:, :] == 0.0))
    print("KERNEL_OK")
</pallas_src>

<mosaic_0001>
module attributes {stable_mosaic.version = 11 : i64} {
  func.func @bilstm_kernel(%arg0: i32, %arg1: memref<16x2x128xbf16, #tpu.memory_space<vmem>>, %arg2: memref<2x1xi32, #tpu.memory_space<vmem>>, %arg3: memref<16x64xbf16, #tpu.memory_space<vmem>>, %arg4: memref<16x64xbf16, #tpu.memory_space<vmem>>, %arg5: memref<2x16x32xf32, #tpu.memory_space<vmem>>, %arg6: memref<16x2x32xf32, #tpu.memory_space<vmem>>) attributes {dimension_semantics = [#tpu.dimension_semantics<parallel>], iteration_bounds = array<i64: 1>, scalar_prefetch = 0 : i64, scratch_operands = 1 : i64, tpu.core_type = #tpu.core_type<tc>, window_params = [{transform_indices = @transform_0, window_bounds = array<i64: 16, 2, 128>}, {transform_indices = @transform_1, window_bounds = array<i64: 2, 1>}, {pipeline_mode = #tpu.pipeline_mode<synchronous>, transform_indices = @transform_2, window_bounds = array<i64: 16, 64>}, {pipeline_mode = #tpu.pipeline_mode<synchronous>, transform_indices = @transform_3, window_bounds = array<i64: 16, 64>}, {transform_indices = @transform_4, window_bounds = array<i64: 2, 16, 32>}]} {
    %c0 = arith.constant 0 : index
    %c0_0 = arith.constant 0 : index
    %0 = vector.load %arg2[%c0, %c0_0] : memref<2x1xi32, #tpu.memory_space<vmem>>, vector<2x1xi32>
    %cst = arith.constant 0.000000e+00 : f32
    %1 = vector.broadcast %cst : f32 to vector<2x16xf32>
    %c0_i32 = arith.constant 0 : i32
    %c16_i32 = arith.constant 16 : i32
    %2 = arith.addi %c0_i32, %c16_i32 : i32
    %c1_i32 = arith.constant 1 : i32
    %3:4 = scf.for %arg7 = %c0_i32 to %2 step %c1_i32 iter_args(%arg8 = %1, %arg9 = %1, %arg10 = %1, %arg11 = %1) -> (vector<2x16xf32>, vector<2x16xf32>, vector<2x16xf32>, vector<2x16xf32>)  : i32 {
      %c15_i32 = arith.constant 15 : i32
      %14 = arith.subi %c15_i32, %arg7 : i32
      %15 = arith.index_cast %arg7 : i32 to index
      %c0_13 = arith.constant 0 : index
      %c0_14 = arith.constant 0 : index
      %16 = vector.load %arg1[%15, %c0_13, %c0_14] : memref<16x2x128xbf16, #tpu.memory_space<vmem>>, vector<1x2x64xbf16>
      %17 = vector.shape_cast %16 : vector<1x2x64xbf16> to vector<2x64xbf16>
      %18 = arith.extf %17 : vector<2x64xbf16> to vector<2x64xf32>
      %19 = arith.index_cast %14 : i32 to index
      %c0_15 = arith.constant 0 : index
      %c64 = arith.constant 64 : index
      %20 = vector.load %arg1[%19, %c0_15, %c64] : memref<16x2x128xbf16, #tpu.memory_space<vmem>>, vector<1x2x64xbf16>
      %21 = vector.shape_cast %20 : vector<1x2x64xbf16> to vector<2x64xbf16>
      %22 = arith.extf %21 : vector<2x64xbf16> to vector<2x64xf32>
      %23 = arith.truncf %arg8 : vector<2x16xf32> to vector<2x16xbf16>
      %c0_16 = arith.constant 0 : index
      %c0_17 = arith.constant 0 : index
      %24 = vector.load %arg3[%c0_16, %c0_17] : memref<16x64xbf16, #tpu.memory_space<vmem>>, vector<16x64xbf16>
      %cst_18 = arith.constant dense<0.000000e+00> : vector<2x64xf32>
      %25 = tpu.matmul %23, %24, %cst_18 {dimension_numbers = #tpu.dot_dimension_numbers<[1], [0], [0], [1], [0, 0, 1, 1], [], []>} : vector<2x16xbf16>, vector<16x64xbf16>, vector<2x64xf32> -> vector<2x64xf32>
      %26 = arith.addf %18, %25 : vector<2x64xf32>
      %27 = vector.extract_strided_slice %26 {offsets = [0, 0], sizes = [2, 16], strides = [1, 1]} : vector<2x64xf32> to vector<2x16xf32>
      %28 = arith.negf %27 : vector<2x16xf32>
      %29 = math.exp %28 : vector<2x16xf32>
      %cst_19 = arith.constant 1.000000e+00 : f32
      %30 = vector.broadcast %cst_19 : f32 to vector<2x16xf32>
      %31 = arith.addf %30, %29 : vector<2x16xf32>
      %32 = arith.divf %30, %31 : vector<2x16xf32>
      %33 = vector.extract_strided_slice %26 {offsets = [0, 16], sizes = [2, 16], strides = [1, 1]} : vector<2x64xf32> to vector<2x16xf32>
      %34 = arith.negf %33 : vector<2x16xf32>
      %35 = math.exp %34 : vector<2x16xf32>
      %cst_20 = arith.constant 1.000000e+00 : f32
      %36 = vector.broadcast %cst_20 : f32 to vector<2x16xf32>
      %37 = arith.addf %36, %35 : vector<2x16xf32>
      %38 = arith.divf %36, %37 : vector<2x16xf32>
      %39 = vector.extract_strided_slice %26 {offsets = [0, 32], sizes = [2, 16], strides = [1, 1]} : vector<2x64xf32> to vector<2x16xf32>
      %40 = math.tanh %39 : vector<2x16xf32>
      %41 = vector.extract_strided_slice %26 {offsets = [0, 48], sizes = [2, 16], strides = [1, 1]} : vector<2x64xf32> to vector<2x16xf32>
      %42 = arith.negf %41 : vector<2x16xf32>
      %43 = math.exp %42 : vector<2x16xf32>
      %cst_21 = arith.constant 1.000000e+00 : f32
      %44 = vector.broadcast %cst_21 : f32 to vector<2x16xf32>
      %45 = arith.addf %44, %43 : vector<2x16xf32>
      %46 = arith.divf %44, %45 : vector<2x16xf32>
      %47 = arith.mulf %38, %arg9 : vector<2x16xf32>
      %48 = arith.mulf %32, %40 : vector<2x16xf32>
      %49 = arith.addf %47, %48 : vector<2x16xf32>
      %50 = math.tanh %49 : vector<2x16xf32>
      %51 = arith.mulf %46, %50 : vector<2x16xf32>
      %52 = arith.truncf %arg10 : vector<2x16xf32> to vector<2x16xbf16>
      %c0_22 = arith.constant 0 : index
      %c0_23 = arith.constant 0 : index
      %53 = vector.load %arg4[%c0_22, %c0_23] : memref<16x64xbf16, #tpu.memory_space<vmem>>, vector<16x64xbf16>
      %cst_24 = arith.constant dense<0.000000e+00> : vector<2x64xf32>
      %54 = tpu.matmul %52, %53, %cst_24 {dimension_numbers = #tpu.dot_dimension_numbers<[1], [0], [0], [1], [0, 0, 1, 1], [], []>} : vector<2x16xbf16>, vector<16x64xbf16>, vector<2x64xf32> -> vector<2x64xf32>
      %55 = arith.addf %22, %54 : vector<2x64xf32>
      %56 = vector.extract_strided_slice %55 {offsets = [0, 0], sizes = [2, 16], strides = [1, 1]} : vector<2x64xf32> to vector<2x16xf32>
      %57 = arith.negf %56 : vector<2x16xf32>
      %58 = math.exp %57 : vector<2x16xf32>
      %cst_25 = arith.constant 1.000000e+00 : f32
      %59 = vector.broadcast %cst_25 : f32 to vector<2x16xf32>
      %60 = arith.addf %59, %58 : vector<2x16xf32>
      %61 = arith.divf %59, %60 : vector<2x16xf32>
      %62 = vector.extract_strided_slice %55 {offsets = [0, 16], sizes = [2, 16], strides = [1, 1]} : vector<2x64xf32> to vector<2x16xf32>
      %63 = arith.negf %62 : vector<2x16xf32>
      %64 = math.exp %63 : vector<2x16xf32>
      %cst_26 = arith.constant 1.000000e+00 : f32
      %65 = vector.broadcast %cst_26 : f32 to vector<2x16xf32>
      %66 = arith.addf %65, %64 : vector<2x16xf32>
      %67 = arith.divf %65, %66 : vector<2x16xf32>
      %68 = vector.extract_strided_slice %55 {offsets = [0, 32], sizes = [2, 16], strides = [1, 1]} : vector<2x64xf32> to vector<2x16xf32>
      %69 = math.tanh %68 : vector<2x16xf32>
      %70 = vector.extract_strided_slice %55 {offsets = [0, 48], sizes = [2, 16], strides = [1, 1]} : vector<2x64xf32> to vector<2x16xf32>
      %71 = arith.negf %70 : vector<2x16xf32>
      %72 = math.exp %71 : vector<2x16xf32>
      %cst_27 = arith.constant 1.000000e+00 : f32
      %73 = vector.broadcast %cst_27 : f32 to vector<2x16xf32>
      %74 = arith.addf %73, %72 : vector<2x16xf32>
      %75 = arith.divf %73, %74 : vector<2x16xf32>
      %76 = arith.mulf %67, %arg11 : vector<2x16xf32>
      %77 = arith.mulf %61, %69 : vector<2x16xf32>
      %78 = arith.addf %76, %77 : vector<2x16xf32>
      %79 = math.tanh %78 : vector<2x16xf32>
      %80 = arith.mulf %75, %79 : vector<2x16xf32>
      %81 = vector.broadcast %arg7 : i32 to vector<2x1xi32>
      %82 = arith.cmpi slt, %81, %0 : vector<2x1xi32>
      %83 = vector.broadcast %14 : i32 to vector<2x1xi32>
      %84 = arith.cmpi slt, %83, %0 : vector<2x1xi32>
      %85 = vector.shape_cast %82 : vector<2x1xi1> to vector<2x1xi1>
      %86 = vector.broadcast %85 : vector<2x1xi1> to vector<2x16xi1>
      %87 = arith.select %86, %51, %arg8 : vector<2x16xi1>, vector<2x16xf32>
      %88 = vector.shape_cast %82 : vector<2x1xi1> to vector<2x1xi1>
      %89 = vector.broadcast %88 : vector<2x1xi1> to vector<2x16xi1>
      %90 = arith.select %89, %49, %arg9 : vector<2x16xi1>, vector<2x16xf32>
      %91 = vector.shape_cast %84 : vector<2x1xi1> to vector<2x1xi1>
      %92 = vector.broadcast %91 : vector<2x1xi1> to vector<2x16xi1>
      %93 = arith.select %92, %80, %arg10 : vector<2x16xi1>, vector<2x16xf32>
      %94 = vector.shape_cast %84 : vector<2x1xi1> to vector<2x1xi1>
      %95 = vector.broadcast %94 : vector<2x1xi1> to vector<2x16xi1>
      %96 = arith.select %95, %78, %arg11 : vector<2x16xi1>, vector<2x16xf32>
      %cst_28 = arith.constant 0.000000e+00 : f32
      %97 = vector.shape_cast %82 : vector<2x1xi1> to vector<2x1xi1>
      %98 = vector.broadcast %97 : vector<2x1xi1> to vector<2x16xi1>
      %99 = vector.broadcast %cst_28 : f32 to vector<2x16xf32>
      %100 = arith.select %98, %51, %99 : vector<2x16xi1>, vector<2x16xf32>
      %101 = arith.index_cast %arg7 : i32 to index
      %c0_29 = arith.constant 0 : index
      %c0_30 = arith.constant 0 : index
      %102 = vector.load %arg6[%101, %c0_29, %c0_30] : memref<16x2x32xf32, #tpu.memory_space<vmem>>, vector<1x2x16xf32>
      %103 = vector.shape_cast %102 : vector<1x2x16xf32> to vector<2x16xf32>
      %104 = vector.shape_cast %100 : vector<2x16xf32> to vector<1x2x16xf32>
      tpu.vector_store %arg6[%101, %c0_29, %c0_30], %104 {strides = array<i32>} : memref<16x2x32xf32, #tpu.memory_space<vmem>>, vector<1x2x16xf32>,
      %cst_31 = arith.constant 0.000000e+00 : f32
      %105 = vector.shape_cast %84 : vector<2x1xi1> to vector<2x1xi1>
      %106 = vector.broadcast %105 : vector<2x1xi1> to vector<2x16xi1>
      %107 = vector.broadcast %cst_31 : f32 to vector<2x16xf32>
      %108 = arith.select %106, %80, %107 : vector<2x16xi1>, vector<2x16xf32>
      %109 = arith.index_cast %14 : i32 to index
      %c0_32 = arith.constant 0 : index
      %c16 = arith.constant 16 : index
      %110 = vector.load %arg6[%109, %c0_32, %c16] : memref<16x2x32xf32, #tpu.memory_space<vmem>>, vector<1x2x16xf32>
      %111 = vector.shape_cast %110 : vector<1x2x16xf32> to vector<2x16xf32>
      %112 = vector.shape_cast %108 : vector<2x16xf32> to vector<1x2x16xf32>
      tpu.vector_store %arg6[%109, %c0_32, %c16], %112 {strides = array<i32>} : memref<16x2x32xf32, #tpu.memory_space<vmem>>, vector<1x2x16xf32>,
      scf.yield %87, %90, %93, %96 : vector<2x16xf32>, vector<2x16xf32>, vector<2x16xf32>, vector<2x16xf32>
    }
    %c16_i32_1 = arith.constant 16 : i32
    %c0_2 = arith.constant 0 : index
    %c0_3 = arith.constant 0 : index
    %c0_4 = arith.constant 0 : index
    %4 = vector.load %arg6[%c0_2, %c0_3, %c0_4] : memref<16x2x32xf32, #tpu.memory_space<vmem>>, vector<16x1x32xf32>
    %5 = vector.shape_cast %4 : vector<16x1x32xf32> to vector<16x32xf32>
    %c0_5 = arith.constant 0 : index
    %c0_6 = arith.constant 0 : index
    %c0_7 = arith.constant 0 : index
    %6 = vector.load %arg5[%c0_5, %c0_6, %c0_7] : memref<2x16x32xf32, #tpu.memory_space<vmem>>, vector<1x16x32xf32>
    %7 = vector.shape_cast %6 : vector<1x16x32xf32> to vector<16x32xf32>
    %8 = vector.shape_cast %5 : vector<16x32xf32> to vector<1x16x32xf32>
    tpu.vector_store %arg5[%c0_5, %c0_6, %c0_7], %8 {strides = array<i32>} : memref<2x16x32xf32, #tpu.memory_space<vmem>>, vector<1x16x32xf32>,
    %c0_8 = arith.constant 0 : index
    %c1 = arith.constant 1 : index
    %c0_9 = arith.constant 0 : index
    %9 = vector.load %arg6[%c0_8, %c1, %c0_9] : memref<16x2x32xf32, #tpu.memory_space<vmem>>, vector<16x1x32xf32>
    %10 = vector.shape_cast %9 : vector<16x1x32xf32> to vector<16x32xf32>
    %c1_10 = arith.constant 1 : index
    %c0_11 = arith.constant 0 : index
    %c0_12 = arith.constant 0 : index
    %11 = vector.load %arg5[%c1_10, %c0_11, %c0_12] : memref<2x16x32xf32, #tpu.memory_space<vmem>>, vector<1x16x32xf32>
    %12 = vector.shape_cast %11 : vector<1x16x32xf32> to vector<16x32xf32>
    %13 = vector.shape_cast %10 : vector<16x32xf32> to vector<1x16x32xf32>
    tpu.vector_store %arg5[%c1_10, %c0_11, %c0_12], %13 {strides = array<i32>} : memref<2x16x32xf32, #tpu.memory_space<vmem>>, vector<1x16x32xf32>,
    return
  }
  func.func @transform_0(%arg0: i32) -> (i32, i32, i32) {
    %c0_i32 = arith.constant 0 : i32
    %c0_i32_0 = arith.constant 0 : i32
    %c0_i32_1 = arith.constant 0 : i32
    return %c0_i32, %arg0, %c0_i32_0 : i32, i32, i32
  }
  func.func @transform_1(%arg0: i32) -> (i32, i32) {
    %c0_i32 = arith.constant 0 : i32
    %c0_i32_0 = arith.constant 0 : i32
    return %arg0, %c0_i32 : i32, i32
  }
  func.func @transform_2(%arg0: i32) -> (i32, i32) {
    %c0_i32 = arith.constant 0 : i32
    %c0_i32_0 = arith.constant 0 : i32
    %c0_i32_1 = arith.constant 0 : i32
    return %c0_i32, %c0_i32_0 : i32, i32
  }
  func.func @transform_3(%arg0: i32) -> (i32, i32) {
    %c0_i32 = arith.constant 0 : i32
    %c0_i32_0 = arith.constant 0 : i32
    %c0_i32_1 = arith.constant 0 : i32
    return %c0_i32, %c0_i32_0 : i32, i32
  }
  func.func @transform_4(%arg0: i32) -> (i32, i32, i32) {
    %c0_i32 = arith.constant 0 : i32
    %c0_i32_0 = arith.constant 0 : i32
    %c0_i32_1 = arith.constant 0 : i32
    return %arg0, %c0_i32, %c0_i32_0 : i32, i32, i32
  }
}

module attributes {stable_mosaic.version = 11 : i64} {
  func.func @encoder_conv_gates_kernel(%arg0: i32, %arg1: memref<1x16x32xf32, #tpu.memory_space<vmem>>, %arg2: memref<3x5x32x32xbf16, #tpu.memory_space<vmem>>, %arg3: memref<3x1x32xf32, #tpu.memory_space<vmem>>, %arg4: memref<32x128xbf16, #tpu.memory_space<vmem>>, %arg5: memref<1x128xf32, #tpu.memory_space<vmem>>, %arg6: memref<16x128xbf16, #tpu.memory_space<vmem>>, %arg7: memref<32x32xf32, #tpu.memory_space<vmem>>) attributes {dimension_semantics = [#tpu.dimension_semantics<parallel>], iteration_bounds = array<i64: 2>, scalar_prefetch = 0 : i64, scratch_operands = 1 : i64, tpu.core_type = #tpu.core_type<tc>, window_params = [{transform_indices = @transform_0, window_bounds = array<i64: 1, 16, 32>}, {pipeline_mode = #tpu.pipeline_mode<synchronous>, transform_indices = @transform_1, window_bounds = array<i64: 3, 5, 32, 32>}, {pipeline_mode = #tpu.pipeline_mode<synchronous>, transform_indices = @transform_2, window_bounds = array<i64: 3, 1, 32>}, {pipeline_mode = #tpu.pipeline_mode<synchronous>, transform_indices = @transform_3, window_bounds = array<i64: 32, 128>}, {pipeline_mode = #tpu.pipeline_mode<synchronous>, transform_indices = @transform_4, window_bounds = array<i64: 1, 128>}, {transform_indices = @transform_5, window_bounds = array<i64: 16, 128>}]} {
    %cst = arith.constant 0.000000e+00 : f32
    %0 = vector.broadcast %cst : f32 to vector<8x32xf32>
    %c0 = arith.constant 0 : index
    %c0_0 = arith.constant 0 : index
    %1 = vector.load %arg7[%c0, %c0_0] : memref<32x32xf32, #tpu.memory_space<vmem>>, vector<8x32xf32>
    tpu.vector_store %arg7[%c0, %c0_0], %0 {strides = array<i32>} : memref<32x32xf32, #tpu.memory_space<vmem>>, vector<8x32xf32>,
    %c24 = arith.constant 24 : index
    %c0_1 = arith.constant 0 : index
    %2 = vector.load %arg7[%c24, %c0_1] : memref<32x32xf32, #tpu.memory_space<vmem>>, vector<8x32xf32>
    tpu.vector_store %arg7[%c24, %c0_1], %0 {strides = array<i32>} : memref<32x32xf32, #tpu.memory_space<vmem>>, vector<8x32xf32>,
    %c0_2 = arith.constant 0 : index
    %c0_3 = arith.constant 0 : index
    %c0_4 = arith.constant 0 : index
    %3 = vector.load %arg1[%c0_2, %c0_3, %c0_4] : memref<1x16x32xf32, #tpu.memory_space<vmem>>, vector<1x16x32xf32>
    %4 = vector.shape_cast %3 : vector<1x16x32xf32> to vector<16x32xf32>
    %c8 = arith.constant 8 : index
    %c0_5 = arith.constant 0 : index
    %5 = vector.load %arg7[%c8, %c0_5] : memref<32x32xf32, #tpu.memory_space<vmem>>, vector<16x32xf32>
    tpu.vector_store %arg7[%c8, %c0_5], %4 {strides = array<i32>} : memref<32x32xf32, #tpu.memory_space<vmem>>, vector<16x32xf32>,
    %cst_6 = arith.constant 0.000000e+00 : f32
    %6 = vector.broadcast %cst_6 : f32 to vector<16x32xf32>
    %c6 = arith.constant 6 : index
    %c0_7 = arith.constant 0 : index
    %7 = vector.load %arg7[%c6, %c0_7] : memref<32x32xf32, #tpu.memory_space<vmem>>, vector<16x32xf32>
    %8 = arith.truncf %7 : vector<16x32xf32> to vector<16x32xbf16>
    %c0_8 = arith.constant 0 : index
    %c0_9 = arith.constant 0 : index
    %c0_10 = arith.constant 0 : index
    %c0_11 = arith.constant 0 : index
    %9 = vector.load %arg2[%c0_8, %c0_9, %c0_10, %c0_11] : memref<3x5x32x32xbf16, #tpu.memory_space<vmem>>, vector<1x1x32x32xbf16>
    %10 = vector.shape_cast %9 : vector<1x1x32x32xbf16> to vector<32x32xbf16>
    %cst_12 = arith.constant dense<0.000000e+00> : vector<16x32xf32>
    %11 = tpu.matmul %8, %10, %cst_12 {dimension_numbers = #tpu.dot_dimension_numbers<[1], [0], [0], [1], [0, 0, 1, 1], [], []>} : vector<16x32xbf16>, vector<32x32xbf16>, vector<16x32xf32> -> vector<16x32xf32>
    %12 = arith.addf %6, %11 : vector<16x32xf32>
    %c7 = arith.constant 7 : index
    %c0_13 = arith.constant 0 : index
    %13 = vector.load %arg7[%c7, %c0_13] : memref<32x32xf32, #tpu.memory_space<vmem>>, vector<16x32xf32>
    %14 = arith.truncf %13 : vector<16x32xf32> to vector<16x32xbf16>
    %c0_14 = arith.constant 0 : index
    %c1 = arith.constant 1 : index
    %c0_15 = arith.constant 0 : index
    %c0_16 = arith.constant 0 : index
    %15 = vector.load %arg2[%c0_14, %c1, %c0_15, %c0_16] : memref<3x5x32x32xbf16, #tpu.memory_space<vmem>>, vector<1x1x32x32xbf16>
    %16 = vector.shape_cast %15 : vector<1x1x32x32xbf16> to vector<32x32xbf16>
    %cst_17 = arith.constant dense<0.000000e+00> : vector<16x32xf32>
    %17 = tpu.matmul %14, %16, %cst_17 {dimension_numbers = #tpu.dot_dimension_numbers<[1], [0], [0], [1], [0, 0, 1, 1], [], []>} : vector<16x32xbf16>, vector<32x32xbf16>, vector<16x32xf32> -> vector<16x32xf32>
    %18 = arith.addf %12, %17 : vector<16x32xf32>
    %c8_18 = arith.constant 8 : index
    %c0_19 = arith.constant 0 : index
    %19 = vector.load %arg7[%c8_18, %c0_19] : memref<32x32xf32, #tpu.memory_space<vmem>>, vector<16x32xf32>
    %20 = arith.truncf %19 : vector<16x32xf32> to vector<16x32xbf16>
    %c0_20 = arith.constant 0 : index
    %c2 = arith.constant 2 : index
    %c0_21 = arith.constant 0 : index
    %c0_22 = arith.constant 0 : index
    %21 = vector.load %arg2[%c0_20, %c2, %c0_21, %c0_22] : memref<3x5x32x32xbf16, #tpu.memory_space<vmem>>, vector<1x1x32x32xbf16>
    %22 = vector.shape_cast %21 : vector<1x1x32x32xbf16> to vector<32x32xbf16>
    %cst_23 = arith.constant dense<0.000000e+00> : vector<16x32xf32>
    %23 = tpu.matmul %20, %22, %cst_23 {dimension_numbers = #tpu.dot_dimension_numbers<[1], [0], [0], [1], [0, 0, 1, 1], [], []>} : vector<16x32xbf16>, vector<32x32xbf16>, vector<16x32xf32> -> vector<16x32xf32>
    %24 = arith.addf %18, %23 : vector<16x32xf32>
    %c9 = arith.constant 9 : index
    %c0_24 = arith.constant 0 : index
    %25 = vector.load %arg7[%c9, %c0_24] : memref<32x32xf32, #tpu.memory_space<vmem>>, vector<16x32xf32>
    %26 = arith.truncf %25 : vector<16x32xf32> to vector<16x32xbf16>
    %c0_25 = arith.constant 0 : index
    %c3 = arith.constant 3 : index
    %c0_26 = arith.constant 0 : index
    %c0_27 = arith.constant 0 : index
    %27 = vector.load %arg2[%c0_25, %c3, %c0_26, %c0_27] : memref<3x5x32x32xbf16, #tpu.memory_space<vmem>>, vector<1x1x32x32xbf16>
    %28 = vector.shape_cast %27 : vector<1x1x32x32xbf16> to vector<32x32xbf16>
    %cst_28 = arith.constant dense<0.000000e+00> : vector<16x32xf32>
    %29 = tpu.matmul %26, %28, %cst_28 {dimension_numbers = #tpu.dot_dimension_numbers<[1], [0], [0], [1], [0, 0, 1, 1], [], []>} : vector<16x32xbf16>, vector<32x32xbf16>, vector<16x32xf32> -> vector<16x32xf32>
    %30 = arith.addf %24, %29 : vector<16x32xf32>
    %c10 = arith.constant 10 : index
    %c0_29 = arith.constant 0 : index
    %31 = vector.load %arg7[%c10, %c0_29] : memref<32x32xf32, #tpu.memory_space<vmem>>, vector<16x32xf32>
    %32 = arith.truncf %31 : vector<16x32xf32> to vector<16x32xbf16>
    %c0_30 = arith.constant 0 : index
    %c4 = arith.constant 4 : index
    %c0_31 = arith.constant 0 : index
    %c0_32 = arith.constant 0 : index
    %33 = vector.load %arg2[%c0_30, %c4, %c0_31, %c0_32] : memref<3x5x32x32xbf16, #tpu.memory_space<vmem>>, vector<1x1x32x32xbf16>
    %34 = vector.shape_cast %33 : vector<1x1x32x32xbf16> to vector<32x32xbf16>
    %cst_33 = arith.constant dense<0.000000e+00> : vector<16x32xf32>
    %35 = tpu.matmul %32, %34, %cst_33 {dimension_numbers = #tpu.dot_dimension_numbers<[1], [0], [0], [1], [0, 0, 1, 1], [], []>} : vector<16x32xbf16>, vector<32x32xbf16>, vector<16x32xf32> -> vector<16x32xf32>
    %36 = arith.addf %30, %35 : vector<16x32xf32>
    %c0_34 = arith.constant 0 : index
    %c0_35 = arith.constant 0 : index
    %c0_36 = arith.constant 0 : index
    %37 = vector.load %arg3[%c0_34, %c0_35, %c0_36] : memref<3x1x32xf32, #tpu.memory_space<vmem>>, vector<1x1x32xf32>
    %38 = vector.shape_cast %37 : vector<1x1x32xf32> to vector<1x32xf32>
    %39 = vector.broadcast %38 : vector<1x32xf32> to vector<16x32xf32>
    %40 = arith.addf %36, %39 : vector<16x32xf32>
    %cst_37 = arith.constant 0.000000e+00 : f32
    %41 = vector.broadcast %cst_37 : f32 to vector<16x32xf32>
    %42 = arith.maximumf %40, %41 : vector<16x32xf32>
    %c8_38 = arith.constant 8 : index
    %c0_39 = arith.constant 0 : index
    %43 = vector.load %arg7[%c8_38, %c0_39] : memref<32x32xf32, #tpu.memory_space<vmem>>, vector<16x32xf32>
    tpu.vector_store %arg7[%c8_38, %c0_39], %42 {strides = array<i32>} : memref<32x32xf32, #tpu.memory_space<vmem>>, vector<16x32xf32>,
    %cst_40 = arith.constant 0.000000e+00 : f32
    %44 = vector.broadcast %cst_40 : f32 to vector<16x32xf32>
    %c6_41 = arith.constant 6 : index
    %c0_42 = arith.constant 0 : index
    %45 = vector.load %arg7[%c6_41, %c0_42] : memref<32x32xf32, #tpu.memory_space<vmem>>, vector<16x32xf32>
    %46 = arith.truncf %45 : vector<16x32xf32> to vector<16x32xbf16>
    %c1_43 = arith.constant 1 : index
    %c0_44 = arith.constant 0 : index
    %c0_45 = arith.constant 0 : index
    %c0_46 = arith.constant 0 : index
    %47 = vector.load %arg2[%c1_43, %c0_44, %c0_45, %c0_46] : memref<3x5x32x32xbf16, #tpu.memory_space<vmem>>, vector<1x1x32x32xbf16>
    %48 = vector.shape_cast %47 : vector<1x1x32x32xbf16> to vector<32x32xbf16>
    %cst_47 = arith.constant dense<0.000000e+00> : vector<16x32xf32>
    %49 = tpu.matmul %46, %48, %cst_47 {dimension_numbers = #tpu.dot_dimension_numbers<[1], [0], [0], [1], [0, 0, 1, 1], [], []>} : vector<16x32xbf16>, vector<32x32xbf16>, vector<16x32xf32> -> vector<16x32xf32>
    %50 = arith.addf %44, %49 : vector<16x32xf32>
    %c7_48 = arith.constant 7 : index
    %c0_49 = arith.constant 0 : index
    %51 = vector.load %arg7[%c7_48, %c0_49] : memref<32x32xf32, #tpu.memory_space<vmem>>, vector<16x32xf32>
    %52 = arith.truncf %51 : vector<16x32xf32> to vector<16x32xbf16>
    %c1_50 = arith.constant 1 : index
    %c1_51 = arith.constant 1 : index
    %c0_52 = arith.constant 0 : index
    %c0_53 = arith.constant 0 : index
    %53 = vector.load %arg2[%c1_50, %c1_51, %c0_52, %c0_53] : memref<3x5x32x32xbf16, #tpu.memory_space<vmem>>, vector<1x1x32x32xbf16>
    %54 = vector.shape_cast %53 : vector<1x1x32x32xbf16> to vector<32x32xbf16>
    %cst_54 = arith.constant dense<0.000000e+00> : vector<16x32xf32>
    %55 = tpu.matmul %52, %54, %cst_54 {dimension_numbers = #tpu.dot_dimension_numbers<[1], [0], [0], [1], [0, 0, 1, 1], [], []>} : vector<16x32xbf16>, vector<32x32xbf16>, vector<16x32xf32> -> vector<16x32xf32>
    %56 = arith.addf %50, %55 : vector<16x32xf32>
    %c8_55 = arith.constant 8 : index
    %c0_56 = arith.constant 0 : index
    %57 = vector.load %arg7[%c8_55, %c0_56] : memref<32x32xf32, #tpu.memory_space<vmem>>, vector<16x32xf32>
    %58 = arith.truncf %57 : vector<16x32xf32> to vector<16x32xbf16>
    %c1_57 = arith.constant 1 : index
    %c2_58 = arith.constant 2 : index
    %c0_59 = arith.constant 0 : index
    %c0_60 = arith.constant 0 : index
    %59 = vector.load %arg2[%c1_57, %c2_58, %c0_59, %c0_60] : memref<3x5x32x32xbf16, #tpu.memory_space<vmem>>, vector<1x1x32x32xbf16>
    %60 = vector.shape_cast %59 : vector<1x1x32x32xbf16> to vector<32x32xbf16>
    %cst_61 = arith.constant dense<0.000000e+00> : vector<16x32xf32>
    %61 = tpu.matmul %58, %60, %cst_61 {dimension_numbers = #tpu.dot_dimension_numbers<[1], [0], [0], [1], [0, 0, 1, 1], [], []>} : vector<16x32xbf16>, vector<32x32xbf16>, vector<16x32xf32> -> vector<16x32xf32>
    %62 = arith.addf %56, %61 : vector<16x32xf32>
    %c9_62 = arith.constant 9 : index
    %c0_63 = arith.constant 0 : index
    %63 = vector.load %arg7[%c9_62, %c0_63] : memref<32x32xf32, #tpu.memory_space<vmem>>, vector<16x32xf32>
    %64 = arith.truncf %63 : vector<16x32xf32> to vector<16x32xbf16>
    %c1_64 = arith.constant 1 : index
    %c3_65 = arith.constant 3 : index
    %c0_66 = arith.constant 0 : index
    %c0_67 = arith.constant 0 : index
    %65 = vector.load %arg2[%c1_64, %c3_65, %c0_66, %c0_67] : memref<3x5x32x32xbf16, #tpu.memory_space<vmem>>, vector<1x1x32x32xbf16>
    %66 = vector.shape_cast %65 : vector<1x1x32x32xbf16> to vector<32x32xbf16>
    %cst_68 = arith.constant dense<0.000000e+00> : vector<16x32xf32>
    %67 = tpu.matmul %64, %66, %cst_68 {dimension_numbers = #tpu.dot_dimension_numbers<[1], [0], [0], [1], [0, 0, 1, 1], [], []>} : vector<16x32xbf16>, vector<32x32xbf16>, vector<16x32xf32> -> vector<16x32xf32>
    %68 = arith.addf %62, %67 : vector<16x32xf32>
    %c10_69 = arith.constant 10 : index
    %c0_70 = arith.constant 0 : index
    %69 = vector.load %arg7[%c10_69, %c0_70] : memref<32x32xf32, #tpu.memory_space<vmem>>, vector<16x32xf32>
    %70 = arith.truncf %69 : vector<16x32xf32> to vector<16x32xbf16>
    %c1_71 = arith.constant 1 : index
    %c4_72 = arith.constant 4 : index
    %c0_73 = arith.constant 0 : index
    %c0_74 = arith.constant 0 : index
    %71 = vector.load %arg2[%c1_71, %c4_72, %c0_73, %c0_74] : memref<3x5x32x32xbf16, #tpu.memory_space<vmem>>, vector<1x1x32x32xbf16>
    %72 = vector.shape_cast %71 : vector<1x1x32x32xbf16> to vector<32x32xbf16>
    %cst_75 = arith.constant dense<0.000000e+00> : vector<16x32xf32>
    %73 = tpu.matmul %70, %72, %cst_75 {dimension_numbers = #tpu.dot_dimension_numbers<[1], [0], [0], [1], [0, 0, 1, 1], [], []>} : vector<16x32xbf16>, vector<32x32xbf16>, vector<16x32xf32> -> vector<16x32xf32>
    %74 = arith.addf %68, %73 : vector<16x32xf32>
    %c1_76 = arith.constant 1 : index
    %c0_77 = arith.constant 0 : index
    %c0_78 = arith.constant 0 : index
    %75 = vector.load %arg3[%c1_76, %c0_77, %c0_78] : memref<3x1x32xf32, #tpu.memory_space<vmem>>, vector<1x1x32xf32>
    %76 = vector.shape_cast %75 : vector<1x1x32xf32> to vector<1x32xf32>
    %77 = vector.broadcast %76 : vector<1x32xf32> to vector<16x32xf32>
    %78 = arith.addf %74, %77 : vector<16x32xf32>
    %cst_79 = arith.constant 0.000000e+00 : f32
    %79 = vector.broadcast %cst_79 : f32 to vector<16x32xf32>
    %80 = arith.maximumf %78, %79 : vector<16x32xf32>
    %c8_80 = arith.constant 8 : index
    %c0_81 = arith.constant 0 : index
    %81 = vector.load %arg7[%c8_80, %c0_81] : memref<32x32xf32, #tpu.memory_space<vmem>>, vector<16x32xf32>
    tpu.vector_store %arg7[%c8_80, %c0_81], %80 {strides = array<i32>} : memref<32x32xf32, #tpu.memory_space<vmem>>, vector<16x32xf32>,
    %cst_82 = arith.constant 0.000000e+00 : f32
    %82 = vector.broadcast %cst_82 : f32 to vector<16x32xf32>
    %c6_83 = arith.constant 6 : index
    %c0_84 = arith.constant 0 : index
    %83 = vector.load %arg7[%c6_83, %c0_84] : memref<32x32xf32, #tpu.memory_space<vmem>>, vector<16x32xf32>
    %84 = arith.truncf %83 : vector<16x32xf32> to vector<16x32xbf16>
    %c2_85 = arith.constant 2 : index
    %c0_86 = arith.constant 0 : index
    %c0_87 = arith.constant 0 : index
    %c0_88 = arith.constant 0 : index
    %85 = vector.load %arg2[%c2_85, %c0_86, %c0_87, %c0_88] : memref<3x5x32x32xbf16, #tpu.memory_space<vmem>>, vector<1x1x32x32xbf16>
    %86 = vector.shape_cast %85 : vector<1x1x32x32xbf16> to vector<32x32xbf16>
    %cst_89 = arith.constant dense<0.000000e+00> : vector<16x32xf32>
    %87 = tpu.matmul %84, %86, %cst_89 {dimension_numbers = #tpu.dot_dimension_numbers<[1], [0], [0], [1], [0, 0, 1, 1], [], []>} : vector<16x32xbf16>, vector<32x32xbf16>, vector<16x32xf32> -> vector<16x32xf32>
    %88 = arith.addf %82, %87 : vector<16x32xf32>
    %c7_90 = arith.constant 7 : index
    %c0_91 = arith.constant 0 : index
    %89 = vector.load %arg7[%c7_90, %c0_91] : memref<32x32xf32, #tpu.memory_space<vmem>>, vector<16x32xf32>
    %90 = arith.truncf %89 : vector<16x32xf32> to vector<16x32xbf16>
    %c2_92 = arith.constant 2 : index
    %c1_93 = arith.constant 1 : index
    %c0_94 = arith.constant 0 : index
    %c0_95 = arith.constant 0 : index
    %91 = vector.load %arg2[%c2_92, %c1_93, %c0_94, %c0_95] : memref<3x5x32x32xbf16, #tpu.memory_space<vmem>>, vector<1x1x32x32xbf16>
    %92 = vector.shape_cast %91 : vector<1x1x32x32xbf16> to vector<32x32xbf16>
    %cst_96 = arith.constant dense<0.000000e+00> : vector<16x32xf32>
    %93 = tpu.matmul %90, %92, %cst_96 {dimension_numbers = #tpu.dot_dimension_numbers<[1], [0], [0], [1], [0, 0, 1, 1], [], []>} : vector<16x32xbf16>, vector<32x32xbf16>, vector<16x32xf32> -> vector<16x32xf32>
    %94 = arith.addf %88, %93 : vector<16x32xf32>
    %c8_97 = arith.constant 8 : index
    %c0_98 = arith.constant 0 : index
    %95 = vector.load %arg7[%c8_97, %c0_98] : memref<32x32xf32, #tpu.memory_space<vmem>>, vector<16x32xf32>
    %96 = arith.truncf %95 : vector<16x32xf32> to vector<16x32xbf16>
    %c2_99 = arith.constant 2 : index
    %c2_100 = arith.constant 2 : index
    %c0_101 = arith.constant 0 : index
    %c0_102 = arith.constant 0 : index
    %97 = vector.load %arg2[%c2_99, %c2_100, %c0_101, %c0_102] : memref<3x5x32x32xbf16, #tpu.memory_space<vmem>>, vector<1x1x32x32xbf16>
    %98 = vector.shape_cast %97 : vector<1x1x32x32xbf16> to vector<32x32xbf16>
    %cst_103 = arith.constant dense<0.000000e+00> : vector<16x32xf32>
    %99 = tpu.matmul %96, %98, %cst_103 {dimension_numbers = #tpu.dot_dimension_numbers<[1], [0], [0], [1], [0, 0, 1, 1], [], []>} : vector<16x32xbf16>, vector<32x32xbf16>, vector<16x32xf32> -> vector<16x32xf32>
    %100 = arith.addf %94, %99 : vector<16x32xf32>
    %c9_104 = arith.constant 9 : index
    %c0_105 = arith.constant 0 : index
    %101 = vector.load %arg7[%c9_104, %c0_105] : memref<32x32xf32, #tpu.memory_space<vmem>>, vector<16x32xf32>
    %102 = arith.truncf %101 : vector<16x32xf32> to vector<16x32xbf16>
    %c2_106 = arith.constant 2 : index
    %c3_107 = arith.constant 3 : index
    %c0_108 = arith.constant 0 : index
    %c0_109 = arith.constant 0 : index
    %103 = vector.load %arg2[%c2_106, %c3_107, %c0_108, %c0_109] : memref<3x5x32x32xbf16, #tpu.memory_space<vmem>>, vector<1x1x32x32xbf16>
    %104 = vector.shape_cast %103 : vector<1x1x32x32xbf16> to vector<32x32xbf16>
    %cst_110 = arith.constant dense<0.000000e+00> : vector<16x32xf32>
    %105 = tpu.matmul %102, %104, %cst_110 {dimension_numbers = #tpu.dot_dimension_numbers<[1], [0], [0], [1], [0, 0, 1, 1], [], []>} : vector<16x32xbf16>, vector<32x32xbf16>, vector<16x32xf32> -> vector<16x32xf32>
    %106 = arith.addf %100, %105 : vector<16x32xf32>
    %c10_111 = arith.constant 10 : index
    %c0_112 = arith.constant 0 : index
    %107 = vector.load %arg7[%c10_111, %c0_112] : memref<32x32xf32, #tpu.memory_space<vmem>>, vector<16x32xf32>
    %108 = arith.truncf %107 : vector<16x32xf32> to vector<16x32xbf16>
    %c2_113 = arith.constant 2 : index
    %c4_114 = arith.constant 4 : index
    %c0_115 = arith.constant 0 : index
    %c0_116 = arith.constant 0 : index
    %109 = vector.load %arg2[%c2_113, %c4_114, %c0_115, %c0_116] : memref<3x5x32x32xbf16, #tpu.memory_space<vmem>>, vector<1x1x32x32xbf16>
    %110 = vector.shape_cast %109 : vector<1x1x32x32xbf16> to vector<32x32xbf16>
    %cst_117 = arith.constant dense<0.000000e+00> : vector<16x32xf32>
    %111 = tpu.matmul %108, %110, %cst_117 {dimension_numbers = #tpu.dot_dimension_numbers<[1], [0], [0], [1], [0, 0, 1, 1], [], []>} : vector<16x32xbf16>, vector<32x32xbf16>, vector<16x32xf32> -> vector<16x32xf32>
    %112 = arith.addf %106, %111 : vector<16x32xf32>
    %c2_118 = arith.constant 2 : index
    %c0_119 = arith.constant 0 : index
    %c0_120 = arith.constant 0 : index
    %113 = vector.load %arg3[%c2_118, %c0_119, %c0_120] : memref<3x1x32xf32, #tpu.memory_space<vmem>>, vector<1x1x32xf32>
    %114 = vector.shape_cast %113 : vector<1x1x32xf32> to vector<1x32xf32>
    %115 = vector.broadcast %114 : vector<1x32xf32> to vector<16x32xf32>
    %116 = arith.addf %112, %115 : vector<16x32xf32>
    %cst_121 = arith.constant 0.000000e+00 : f32
    %117 = vector.broadcast %cst_121 : f32 to vector<16x32xf32>
    %118 = arith.maximumf %116, %117 : vector<16x32xf32>
    %c8_122 = arith.constant 8 : index
    %c0_123 = arith.constant 0 : index
    %119 = vector.load %arg7[%c8_122, %c0_123] : memref<32x32xf32, #tpu.memory_space<vmem>>, vector<16x32xf32>
    tpu.vector_store %arg7[%c8_122, %c0_123], %118 {strides = array<i32>} : memref<32x32xf32, #tpu.memory_space<vmem>>, vector<16x32xf32>,
    %120 = arith.truncf %118 : vector<16x32xf32> to vector<16x32xbf16>
    %c0_124 = arith.constant 0 : index
    %c0_125 = arith.constant 0 : index
    %121 = vector.load %arg4[%c0_124, %c0_125] : memref<32x128xbf16, #tpu.memory_space<vmem>>, vector<32x128xbf16>
    %cst_126 = arith.constant dense<0.000000e+00> : vector<16x128xf32>
    %122 = tpu.matmul %120, %121, %cst_126 {dimension_numbers = #tpu.dot_dimension_numbers<[1], [0], [0], [1], [0, 0, 1, 1], [], []>} : vector<16x32xbf16>, vector<32x128xbf16>, vector<16x128xf32> -> vector<16x128xf32>
    %c0_127 = arith.constant 0 : index
    %c0_128 = arith.constant 0 : index
    %123 = vector.load %arg5[%c0_127, %c0_128] : memref<1x128xf32, #tpu.memory_space<vmem>>, vector<1x128xf32>
    %124 = vector.broadcast %123 : vector<1x128xf32> to vector<16x128xf32>
    %125 = arith.addf %122, %124 : vector<16x128xf32>
    %126 = arith.truncf %125 : vector<16x128xf32> to vector<16x128xbf16>
    %c0_129 = arith.constant 0 : index
    %c0_130 = arith.constant 0 : index
    %127 = vector.load %arg6[%c0_129, %c0_130] : memref<16x128xbf16, #tpu.memory_space<vmem>>, vector<16x128xbf16>
    tpu.vector_store %arg6[%c0_129, %c0_130], %126 {strides = array<i32>} : memref<16x128xbf16, #tpu.memory_space<vmem>>, vector<16x128xbf16>,
    return
  }
  func.func @transform_0(%arg0: i32) -> (i32, i32, i32) {
    %c0_i32 = arith.constant 0 : i32
    %c0_i32_0 = arith.constant 0 : i32
    %c0_i32_1 = arith.constant 0 : i32
    return %arg0, %c0_i32, %c0_i32_0 : i32, i32, i32
  }
  func.func @transform_1(%arg0: i32) -> (i32, i32, i32, i32) {
    %c0_i32 = arith.constant 0 : i32
    %c0_i32_0 = arith.constant 0 : i32
    %c0_i32_1 = arith.constant 0 : i32
    %c0_i32_2 = arith.constant 0 : i32
    %c0_i32_3 = arith.constant 0 : i32
    return %c0_i32, %c0_i32_0, %c0_i32_1, %c0_i32_2 : i32, i32, i32, i32
  }
  func.func @transform_2(%arg0: i32) -> (i32, i32, i32) {
    %c0_i32 = arith.constant 0 : i32
    %c0_i32_0 = arith.constant 0 : i32
    %c0_i32_1 = arith.constant 0 : i32
    %c0_i32_2 = arith.constant 0 : i32
    return %c0_i32, %c0_i32_0, %c0_i32_1 : i32, i32, i32
  }
  func.func @transform_3(%arg0: i32) -> (i32, i32) {
    %c0_i32 = arith.constant 0 : i32
    %c0_i32_0 = arith.constant 0 : i32
    %c0_i32_1 = arith.constant 0 : i32
    return %c0_i32, %c0_i32_0 : i32, i32
  }
  func.func @transform_4(%arg0: i32) -> (i32, i32) {
    %c0_i32 = arith.constant 0 : i32
    %c0_i32_0 = arith.constant 0 : i32
    %c0_i32_1 = arith.constant 0 : i32
    return %c0_i32, %c0_i32_0 : i32, i32
  }
  func.func @transform_5(%arg0: i32) -> (i32, i32) {
    %c0_i32 = arith.constant 0 : i32
    %c0_i32_0 = arith.constant 0 : i32
    return %c0_i32, %arg0 : i32, i32
  }
}

</mosaic_0001>

<llo_original>
// kernel: encoder_forward.3
$region0: #{encoder_forward.3}
  #allocation0 [shape = 'u32[]', space=smem, size = 0x4, offset = 0x4, fixed_abs, tag = 'smem constant byte address 0x4 - core index']
  #allocation1 [shape = 'u32[144,128]{1,0:T(1,128)}', space=vmem, size = 0x12000, scoped, tag = 'internal scratch']
  #allocation2 [shape = 'f32[16,2,32]{2,1,0:T(2,128)}', space=vmem, size = 0x4000, scoped, tag = 'scratch operand']
  %s0 = inlined_call_operand.vmem [shape: bf16[16,2,128], index: 0, kind: input, shape index: {}]
  %s1 = inlined_call_operand.vmem [shape: s32[2,1], index: 1, kind: input, shape index: {}]
  %s2 = inlined_call_operand.vmem [shape: bf16[16,64], index: 2, kind: input, shape index: {}]
  %s3 = inlined_call_operand.vmem [shape: bf16[16,64], index: 3, kind: input, shape index: {}]
  %s4 = inlined_call_operand.hbm [shape: f32[2,16,32], index: 4, kind: output, shape index: {}]
  %s5 = sld [smem:[#allocation0]]
  $region33: #{encoder_forward.3} parent=0
    _
  %s7 = ssub.s32 1, %s5
  %s8 = scalar_select 0, %s7, %s5
  $region1: #{encoder_forward.3} parent=0
    #allocation3 [shape = 'u8[16384]{0}', space=vmem, size = 0x4000, scoped, tag = 'output window, operand 0, single buffered']
    #allocation4 [shape = 's32[1]{0}', space=sflag, size = 0x4, scoped, tag = 'scoped memory for encoder_forward.3']
    %9 = vsyncpa [#allocation4], 0
    // Predicated region
    $region2: #{encoder_forward.3} parent=1 // pred_check
      _
    $region3: #{encoder_forward.3} parent=1 // pred_check_branch
      %11 = sbr.rel (0) target = $region5
    $region4: #{encoder_forward.3} parent=1 // pred_region
      _
    $region5: #{encoder_forward.3} parent=1 // pred_fallthru
      _
    // Predicated region
    $region6: #{encoder_forward.3} parent=1 // pred_check
      _
    $region7: #{encoder_forward.3} parent=1 // pred_check_branch
      %13 = sbr.rel (0) target = $region9
    $region8: #{encoder_forward.3} parent=1 // pred_region
      _
    $region9: #{encoder_forward.3} parent=1 // pred_fallthru
      _
    // Predicated region
    $region10: #{encoder_forward.3} parent=1 // pred_check
      _
    $region11: #{encoder_forward.3} parent=1 // pred_check_branch
      %15 = sbr.rel (0) target = $region13
    $region12: #{encoder_forward.3} parent=1 // pred_region
      _
    $region13: #{encoder_forward.3} parent=1 // pred_fallthru
      _
    // Predicated region
    $region14: #{encoder_forward.3} parent=1 // pred_check
      _
    $region15: #{encoder_forward.3} parent=1 // pred_check_branch
      %17 = sbr.rel (0) target = $region17
    $region16: #{encoder_forward.3} parent=1 // pred_region
      _
    $region17: #{encoder_forward.3} parent=1 // pred_fallthru
      _
    %v19 = vld [vmem:[%s1] sm:$0x3]
    loop: start=0, step=1, limit=16
    $region18: #{encoder_forward.3} parent=1 // loop_pre_header
      _
    $region19: #{encoder_forward.3} parent=1 // loop_header
      %s21 = sphi 0, %s25
      %p22 = scmp.ge.s32.totalorder %s21, 16
      %v26 = vphi 0.0, %v245
      %v27 = vphi 0.0, %v257
      %v28 = vphi 0.0, %v274
      %v29 = vphi 0.0, %v286
    $region20: #{encoder_forward.3} parent=1 // loop_header_branch
      %24 = sbr.rel (%p22) target = $region24
    $region21: #{encoder_forward.3} parent=1 // loop_body
      %s30 = ssub.s32 15, %s21
      %s31 = scalar_lea.vmem %s0, %s21
      %v32 = vld [vmem:[%s31] sm:$0x1]
      %v33 = vunpack.c.l.bf16 %v32
      %s34 = scalar_lea.vmem %s0, %s30
      %v35 = vld [vmem:[%s34] sm:$0x1]
      %v36 = vunpack.c.l.bf16 %v35
      %v37 = vpack.c.bf16 %v26, %v26
      %v38 = vld [vmem:[%s2] sm:$0xf]
      %v39 = vld [vmem:[%s2 + $0x4] sm:$0xf]
      %v42 = vunpack.c.l.b16 %v38
      %v43 = vunpack.c.l.b16 %v39
      %v44 = vpack.c.b16 %v43, %v42
      %vm46 = vcmask 130048
      %v48 = vsel %vm46, %v37, 0
      %50 = vmatprep.subr.bf16.mxu0 0
      %51 = vmatpush1.bf16.msra.mxu0 %v44
      %52 = vmatprep.subr.bf16.mxu0 0
      %53 = vmatpush1.bf16.msra.mxu0 0
      %54 = vmatprep.subr.bf16.mxu0 0
      %55 = vmatpush1.bf16.msra.mxu0 0
      %56 = vmatprep.subr.bf16.mxu0 0
      %57 = vmatpush1.bf16.msra.mxu0 0
      %58 = vmatprep.subr.bf16.mxu0 0
      %59 = vmatpush1.bf16.msra.mxu0 0
      %60 = vmatprep.subr.bf16.mxu0 0
      %61 = vmatpush1.bf16.msra.mxu0 0
      %62 = vmatprep.subr.bf16.mxu0 0
      %63 = vmatpush1.bf16.msra.mxu0 0
      %64 = vmatprep.subr.bf16.mxu0 0
      %65 = vmatpush1.bf16.msra.mxu0 0
      %66 = vmatprep.subr.bf16.mxu0 0
      %67 = vmatpush1.bf16.msra.mxu0 0
      %68 = vmatprep.subr.bf16.mxu0 0
      %69 = vmatpush1.bf16.msra.mxu0 0
      %70 = vmatprep.subr.bf16.mxu0 0
      %71 = vmatpush1.bf16.msra.mxu0 0
      %72 = vmatprep.subr.bf16.mxu0 0
      %73 = vmatpush1.bf16.msra.mxu0 0
      %74 = vmatprep.subr.bf16.mxu0 0
      %75 = vmatpush1.bf16.msra.mxu0 0
      %76 = vmatprep.subr.bf16.mxu0 0
      %77 = vmatpush1.bf16.msra.mxu0 0
      %78 = vmatprep.subr.bf16.mxu0 0
      %79 = vmatpush1.bf16.msra.mxu0 0
      %80 = vmatprep.subr.bf16.mxu0 0
      %81 = vmatpush1.bf16.msra.mxu0 0
      %82 = vmatprep.mubr.bf16.mxu0 0
      %83 = vmatmul.mubr.bf16.gmra.mrb[0].mxu0 %v48
      %v84 = vpop.f32.mrb[0].mxu0
      %v85 = vadd.f32 0.0, %v84
      %v86 = vpop.f32.mrb[0].mxu0
      %v87 = vpop.f32.mrb[0].mxu0
      %v88 = vpop.f32.mrb[0].mxu0
      %89 = vdwg.mxu0
      %v90 = vadd.f32 %v33, %v85
      %v91 = vxor.u32 %v90, 2147483648
      %v92 = vmul.f32 %v91, 1.442695
      %v93 = vpow.pop %v92
      %v94 = vadd.f32 %v93, 1.0
      %v95 = vrcp.pop %v94
      %v96 = vmul.f32 1.0, %v95
      %v97 = vtanh.pop %v90
      %v100 = vunpack.c.l.s4 1983009808
      %v101 = vunpack.c.0.s8 %v100
      %v102 = vlaneseq
      %v103 = vshrl.u32 %v102, 7
      %v104 = vsub.s32 %v101, %v103
      %v105 = vrot.slane %v27, %v104
      %106 = vrot.lane.b32.xlu0 %v105, 16
      %v107 = vpop.permute.xlu0 %106
      %v109 = vmul.f32 %v96, %v107
      %111 = vrot.lane.b32.xlu0 %v97, 96
      %v112 = vpop.permute.xlu0 %111
      %v114 = vmul.f32 %v96, %v112
      %116 = vrot.lane.b32.xlu0 %v114, 16
      %v117 = vpop.permute.xlu0 %116
      %v119 = vadd.f32 %v109, %v117
      %v120 = vtanh.pop %v119
      %122 = vrot.lane.b32.xlu0 %v120, 32
      %v123 = vpop.permute.xlu0 %122
      %v125 = vmul.f32 %v96, %v123
      %v126 = vpack.c.bf16 %v28, %v28
      %v127 = vld [vmem:[%s3] sm:$0xf]
      %v128 = vld [vmem:[%s3 + $0x4] sm:$0xf]
      %v131 = vunpack.c.l.b16 %v127
      %v132 = vunpack.c.l.b16 %v128
      %v133 = vpack.c.b16 %v132, %v131
      %v136 = vsel %vm46, %v126, 0
      %138 = vmatprep.subr.bf16.mxu0 0
      %139 = vmatpush1.bf16.msra.mxu0 %v133
      %140 = vmatprep.subr.bf16.mxu0 0
      %141 = vmatpush1.bf16.msra.mxu0 0
      %142 = vmatprep.subr.bf16.mxu0 0
      %143 = vmatpush1.bf16.msra.mxu0 0
      %144 = vmatprep.subr.bf16.mxu0 0
      %145 = vmatpush1.bf16.msra.mxu0 0
      %146 = vmatprep.subr.bf16.mxu0 0
      %147 = vmatpush1.bf16.msra.mxu0 0
      %148 = vmatprep.subr.bf16.mxu0 0
      %149 = vmatpush1.bf16.msra.mxu0 0
      %150 = vmatprep.subr.bf16.mxu0 0
      %151 = vmatpush1.bf16.msra.mxu0 0
      %152 = vmatprep.subr.bf16.mxu0 0
      %153 = vmatpush1.bf16.msra.mxu0 0
      %154 = vmatprep.subr.bf16.mxu0 0
      %155 = vmatpush1.bf16.msra.mxu0 0
      %156 = vmatprep.subr.bf16.mxu0 0
      %157 = vmatpush1.bf16.msra.mxu0 0
      %158 = vmatprep.subr.bf16.mxu0 0
      %159 = vmatpush1.bf16.msra.mxu0 0
      %160 = vmatprep.subr.bf16.mxu0 0
      %161 = vmatpush1.bf16.msra.mxu0 0
      %162 = vmatprep.subr.bf16.mxu0 0
      %163 = vmatpush1.bf16.msra.mxu0 0
      %164 = vmatprep.subr.bf16.mxu0 0
      %165 = vmatpush1.bf16.msra.mxu0 0
      %166 = vmatprep.subr.bf16.mxu0 0
      %167 = vmatpush1.bf16.msra.mxu0 0
      %168 = vmatprep.subr.bf16.mxu0 0
      %169 = vmatpush1.bf16.msra.mxu0 0
      %170 = vmatprep.mubr.bf16.mxu0 0
      %171 = vmatmul.mubr.bf16.gmra.mrb[0].mxu0 %v136
      %v172 = vpop.f32.mrb[0].mxu0
      %v173 = vadd.f32 0.0, %v172
      %v174 = vpop.f32.mrb[0].mxu0
      %v175 = vpop.f32.mrb[0].mxu0
      %v176 = vpop.f32.mrb[0].mxu0
      %177 = vdwg.mxu0
      %v180 = vunpack.c.l.s4 1983009808
      %v181 = vunpack.c.0.s8 %v180
      %v182 = vlaneseq
      %v183 = vshrl.u32 %v182, 7
      %v184 = vsub.s32 %v181, %v183
      %v185 = vrot.slane %v173, %v184
      %186 = vrot.lane.b32.xlu0 %v185, 64
      %v187 = vpop.permute.xlu0 %186
      %v189 = vadd.f32 %v36, %v187
      %v190 = vxor.u32 %v189, 2147483648
      %v191 = vmul.f32 %v190, 1.442695
      %v192 = vpow.pop %v191
      %v193 = vadd.f32 %v192, 1.0
      %v194 = vrcp.pop %v193
      %v195 = vmul.f32 1.0, %v194
      %v196 = vtanh.pop %v189
      %v199 = vunpack.c.l.s4 1983009808
      %v200 = vunpack.c.0.s8 %v199
      %v201 = vlaneseq
      %v202 = vshrl.u32 %v201, 7
      %v203 = vsub.s32 %v200, %v202
      %v204 = vrot.slane %v29, %v203
      %205 = vrot.lane.b32.xlu0 %v204, 80
      %v206 = vpop.permute.xlu0 %205
      %v208 = vmul.f32 %v195, %v206
      %210 = vrot.lane.b32.xlu0 %v196, 96
      %v211 = vpop.permute.xlu0 %210
      %v213 = vmul.f32 %v195, %v211
      %215 = vrot.lane.b32.xlu0 %v213, 16
      %v216 = vpop.permute.xlu0 %215
      %v218 = vadd.f32 %v208, %v216
      %v219 = vtanh.pop %v218
      %221 = vrot.lane.b32.xlu0 %v219, 32
      %v222 = vpop.permute.xlu0 %221
      %v224 = vmul.f32 %v195, %v222
      %v225 = vstv %s21
      %vm226 = vcmp.lt.s32.totalorder %v225, %v19
      %v227 = vstv %s30
      %vm228 = vcmp.lt.s32.totalorder %v227, %v19
      %v229 = vsel %vm226, 1, 0
      %230 = vset.pattern.permute.xlu0 0
      %231 = vperm.xlu0 %230, %v229
      %v232 = vpop.permute.xlu0 %231
      %vm233 = vcmp.eq.s32.totalorder %v232, 1
      %v236 = vunpack.c.l.s4 1983009808
      %v237 = vunpack.c.0.s8 %v236
      %v238 = vlaneseq
      %v239 = vshrl.u32 %v238, 7
      %v240 = vsub.s32 %v237, %v239
      %v241 = vrot.slane %v125, %v240
      %242 = vrot.lane.b32.xlu0 %v241, 80
      %v243 = vpop.permute.xlu0 %242
      %v245 = vsel %vm233, %v243, %v26
      %v248 = vunpack.c.l.s4 1983009808
      %v249 = vunpack.c.0.s8 %v248
      %v250 = vlaneseq
      %v251 = vshrl.u32 %v250, 7
      %v252 = vsub.s32 %v249, %v251
      %v253 = vrot.slane %v119, %v252
      %254 = vrot.lane.b32.xlu0 %v253, 112
      %v255 = vpop.permute.xlu0 %254
      %v257 = vsel %vm233, %v255, %v27
      %v258 = vsel %vm228, 1, 0
      %259 = vset.pattern.permute.xlu0 0
      %260 = vperm.xlu0 %259, %v258
      %v261 = vpop.permute.xlu0 %260
      %vm262 = vcmp.eq.s32.totalorder %v261, 1
      %v265 = vunpack.c.l.s4 1983009808
      %v266 = vunpack.c.0.s8 %v265
      %v267 = vlaneseq
      %v268 = vshrl.u32 %v267, 7
      %v269 = vsub.s32 %v266, %v268
      %v270 = vrot.slane %v224, %v269
      %271 = vrot.lane.b32.xlu0 %v270, 16
      %v272 = vpop.permute.xlu0 %271
      %v274 = vsel %vm262, %v272, %v28
      %v277 = vunpack.c.l.s4 1983009808
      %v278 = vunpack.c.0.s8 %v277
      %v279 = vlaneseq
      %v280 = vshrl.u32 %v279, 7
      %v281 = vsub.s32 %v278, %v280
      %v282 = vrot.slane %v218, %v281
      %283 = vrot.lane.b32.xlu0 %v282, 48
      %v284 = vpop.permute.xlu0 %283
      %v286 = vsel %vm262, %v284, %v29
      %v287 = vsel %vm233, %v243, 0.0
      %s288 = smul.u32 %s21, 2
      %s289 = scalar_lea.vmem [#allocation2], %s288
      %vm290 = vcmask 123904
      %291 = vst.msk [vmem:[%s289] sm:$0x3] %vm290, %v287
      %v292 = vsel %vm262, %v272, 0.0
      %294 = vrot.lane.b32.xlu0 %v292, 16
      %v295 = vpop.permute.xlu0 %294
      %s297 = smul.u32 %s30, 2
      %s298 = scalar_lea.vmem [#allocation2], %s297
      %vm299 = vcmask 255104
      %300 = vst.msk [vmem:[%s298] sm:$0x3] %vm299, %v295
    $region22: #{encoder_forward.3} parent=1 // loop_footer
      %s25 = sadd.s32 1, %s21
    $region23: #{encoder_forward.3} parent=1 // loop_footer_branch
      %20 = sbr.rel target = $region19
    $region24: #{encoder_forward.3} parent=1 // loop_exit
      _
    %v301 = vld [vmem:[#allocation2] sm:$0x1]
    %v302 = vld [vmem:[#allocation2 + $0x2] sm:$0x1]
    %v303 = vld [vmem:[#allocation2 + $0x4] sm:$0x1]
    %v304 = vld [vmem:[#allocation2 + $0x6] sm:$0x1]
    %v305 = vld [vmem:[#allocation2 + $0x8] sm:$0x1]
    %v306 = vld [vmem:[#allocation2 + $0xa] sm:$0x1]
    %v307 = vld [vmem:[#allocation2 + $0xc] sm:$0x1]
    %v308 = vld [vmem:[#allocation2 + $0xe] sm:$0x1]
    %v309 = vld [vmem:[#allocation2 + $0x10] sm:$0x1]
    %v310 = vld [vmem:[#allocation2 + $0x12] sm:$0x1]
    %v311 = vld [vmem:[#allocation2 + $0x14] sm:$0x1]
    %v312 = vld [vmem:[#allocation2 + $0x16] sm:$0x1]
    %v313 = vld [vmem:[#allocation2 + $0x18] sm:$0x1]
    %v314 = vld [vmem:[#allocation2 + $0x1a] sm:$0x1]
    %v315 = vld [vmem:[#allocation2 + $0x1c] sm:$0x1]
    %v316 = vld [vmem:[#allocation2 + $0x1e] sm:$0x1]
    %v333 = vrot.slane %v302, 7
    %vm334 = vcmask 1041409
    %v335 = vsel %vm334, %v333, %v301
    %v336 = vrot.slane %v303, 6
    %vm337 = vcmask 1042434
    %v338 = vsel %vm337, %v336, %v335
    %v339 = vrot.slane %v304, 5
    %vm340 = vcmask 1043459
    %v341 = vsel %vm340, %v339, %v338
    %v342 = vrot.slane %v305, 4
    %vm343 = vcmask 1044484
    %v344 = vsel %vm343, %v342, %v341
    %v345 = vrot.slane %v306, 3
    %vm346 = vcmask 1045509
    %v347 = vsel %vm346, %v345, %v344
    %v348 = vrot.slane %v307, 2
    %vm349 = vcmask 1046534
    %v350 = vsel %vm349, %v348, %v347
    %v351 = vrot.slane %v308, 1
    %vm352 = vcmask 1047559
    %v353 = vsel %vm352, %v351, %v350
    %v354 = vrot.slane %v310, 7
    %v355 = vsel %vm334, %v354, %v309
    %v356 = vrot.slane %v311, 6
    %v357 = vsel %vm337, %v356, %v355
    %v358 = vrot.slane %v312, 5
    %v359 = vsel %vm340, %v358, %v357
    %v360 = vrot.slane %v313, 4
    %v361 = vsel %vm343, %v360, %v359
    %v362 = vrot.slane %v314, 3
    %v363 = vsel %vm346, %v362, %v361
    %v364 = vrot.slane %v315, 2
    %v365 = vsel %vm349, %v364, %v363
    %v366 = vrot.slane %v316, 1
    %v367 = vsel %vm352, %v366, %v365
    %vm370 = vcmask 261120
    %371 = vst.msk [vmem:[#allocation3] sm:$0xff] %vm370, %v353
    %372 = vst.msk [vmem:[#allocation3 + $0x8] sm:$0xff] %vm370, %v367
    %v373 = vld [vmem:[#allocation2 + $0x1] sm:$0x1]
    %v374 = vld [vmem:[#allocation2 + $0x3] sm:$0x1]
    %v375 = vld [vmem:[#allocation2 + $0x5] sm:$0x1]
    %v376 = vld [vmem:[#allocation2 + $0x7] sm:$0x1]
    %v377 = vld [vmem:[#allocation2 + $0x9] sm:$0x1]
    %v378 = vld [vmem:[#allocation2 + $0xb] sm:$0x1]
    %v379 = vld [vmem:[#allocation2 + $0xd] sm:$0x1]
    %v380 = vld [vmem:[#allocation2 + $0xf] sm:$0x1]
    %v381 = vld [vmem:[#allocation2 + $0x11] sm:$0x1]
    %v382 = vld [vmem:[#allocation2 + $0x13] sm:$0x1]
    %v383 = vld [vmem:[#allocation2 + $0x15] sm:$0x1]
    %v384 = vld [vmem:[#allocation2 + $0x17] sm:$0x1]
    %v385 = vld [vmem:[#allocation2 + $0x19] sm:$0x1]
    %v386 = vld [vmem:[#allocation2 + $0x1b] sm:$0x1]
    %v387 = vld [vmem:[#allocation2 + $0x1d] sm:$0x1]
    %v388 = vld [vmem:[#allocation2 + $0x1f] sm:$0x1]
    %v405 = vrot.slane %v374, 7
    %v406 = vsel %vm334, %v405, %v373
    %v407 = vrot.slane %v375, 6
    %v408 = vsel %vm337, %v407, %v406
    %v409 = vrot.slane %v376, 5
    %v410 = vsel %vm340, %v409, %v408
    %v411 = vrot.slane %v377, 4
    %v412 = vsel %vm343, %v411, %v410
    %v413 = vrot.slane %v378, 3
    %v414 = vsel %vm346, %v413, %v412
    %v415 = vrot.slane %v379, 2
    %v416 = vsel %vm349, %v415, %v414
    %v417 = vrot.slane %v380, 1
    %v418 = vsel %vm352, %v417, %v416
    %v419 = vrot.slane %v382, 7
    %v420 = vsel %vm334, %v419, %v381
    %v421 = vrot.slane %v383, 6
    %v422 = vsel %vm337, %v421, %v420
    %v423 = vrot.slane %v384, 5
    %v424 = vsel %vm340, %v423, %v422
    %v425 = vrot.slane %v385, 4
    %v426 = vsel %vm343, %v425, %v424
    %v427 = vrot.slane %v386, 3
    %v428 = vsel %vm346, %v427, %v426
    %v429 = vrot.slane %v387, 2
    %v430 = vsel %vm349, %v429, %v428
    %v431 = vrot.slane %v388, 1
    %v432 = vsel %vm352, %v431, %v430
    %s435 = scalar_lea.vmem [#allocation3], 16
    %436 = vst.msk [vmem:[%s435] sm:$0xff] %vm370, %v418
    %437 = vst.msk [vmem:[%s435 + $0x8] sm:$0xff] %vm370, %v432
    // Predicated region
    $region25: #{encoder_forward.3} parent=1 // pred_check
      _
    $region26: #{encoder_forward.3} parent=1 // pred_check_branch
      %439 = sbr.rel (0) target = $region28
    $region27: #{encoder_forward.3} parent=1 // pred_region
      %s441 = ssub.s32 512, 512
      %442 = vsyncadd [#allocation4], %s441
      %s443 = sshll.u32 [#allocation3], 4
      %s444 = int_to_ptr.vmem [resolvable:$true] %s443
      %449 = dma.vmem_to_hbm [thread:$0]  %s444, 512, %s4, [#allocation4], 128, 128, 8
    $region28: #{encoder_forward.3} parent=1 // pred_fallthru
      _
    // Predicated region
    $region29: #{encoder_forward.3} parent=1 // pred_check
      _
    $region30: #{encoder_forward.3} parent=1 // pred_check_branch
      %451 = sbr.rel (0) target = $region32
    $region31: #{encoder_forward.3} parent=1 // pred_region
      %452 = dma.done [#allocation4], 512
    $region32: #{encoder_forward.3} parent=1 // pred_fallthru
      _
    %453 = vsyncpa [#allocation4], 1

// kernel: encoder_forward.2
$region0: #{encoder_forward.2}
  #allocation0 [shape = 'u32[]', space=smem, size = 0x4, offset = 0x4, fixed_abs, tag = 'smem constant byte address 0x4 - core index']
  #allocation1 [shape = 'u32[144,128]{1,0:T(1,128)}', space=vmem, size = 0x12000, scoped, tag = 'internal scratch']
  #allocation2 [shape = 'f32[32,32]{1,0:T(8,128)}', space=vmem, size = 0x4000, scoped, tag = 'scratch operand']
  %s0 = inlined_call_operand.hbm [shape: f32[2,16,32], index: 0, kind: input, shape index: {}]
  %s1 = inlined_call_operand.hbm [shape: bf16[3,5,32,32], index: 1, kind: input, shape index: {}]
  %s2 = inlined_call_operand.vmem [shape: f32[3,1,32], index: 2, kind: input, shape index: {}]
  %s3 = inlined_call_operand.vmem [shape: bf16[32,128], index: 3, kind: input, shape index: {}]
  %s4 = inlined_call_operand.vmem [shape: f32[1,128], index: 4, kind: input, shape index: {}]
  %s5 = inlined_call_operand.vmem [shape: bf16[16,256], index: 5, kind: output, shape index: {}]
  %s6 = sld [smem:[#allocation0]]
  $region98: #{encoder_forward.2} parent=0
    _
  %s8 = ssub.s32 1, %s6
  %s9 = scalar_select 0, %s8, %s6
  $region1: #{encoder_forward.2} parent=0
    #allocation3 [shape = 'u8[16384]{0}', space=vmem, size = 0x4000, scoped, tag = 'input window, operand 0']
    #allocation4 [shape = 's32[2]{0}', space=sflag, size = 0x8, scoped, tag = 'scoped memory for encoder_forward.2']
    #allocation5 [shape = 'u8[122880]{0}', space=vmem, size = 0x1e000, scoped, tag = 'input window, operand 1, single buffered']
    #allocation6 [shape = 's32[1]{0}', space=sflag, size = 0x4, scoped, tag = 'scoped memory for encoder_forward.2']
    #allocation7 [shape = 'u8[8192]{0}', space=vmem, size = 0x2000, scoped, tag = 'output window, operand 0']
    %10 = vsyncpa [#allocation4], 0
    %s11 = scalar_lea.sflag [#allocation4], 1
    %12 = vsyncpa %s11, 0
    %13 = vsyncpa [#allocation6], 0
    loop: start=0, step=1, limit=4
    $region2: #{encoder_forward.2} parent=1 // loop_pre_header
      _
    $region3: #{encoder_forward.2} parent=1 // loop_header
      %s15 = sphi 0, %s19
      %p16 = scmp.ge.s32.totalorder %s15, 4
      %s25 = sphi 0, %s27
      %s28 = sphi 0, %s25
      %s29 = sphi 0, %s28
      %s45 = sphi 0, %s29
      %s49 = sphi 0, %s49
      %s51 = sphi 0, %s49
      %s52 = sphi 0, %s51
      %s66 = sphi 0, %s52
      %s70 = sphi 0, %s70
      %s72 = sphi 0, %s70
      %s73 = sphi 0, %s72
      %s87 = sphi 0, %s73
      %s91 = sphi 0, %s91
      %s93 = sphi 0, %s91
      %s94 = sphi 0, %s93
      %s108 = sphi 0, %s94
      %s112 = sphi 0, %s112
      %s114 = sphi 0, %s112
      %s115 = sphi 0, %s114
      %s129 = sphi 0, %s115
      %s135 = sphi 0, %s137
      %s138 = sphi 0, %s135
      %s139 = sphi 0, %s138
      %s155 = sphi 0, %s139
    $region4: #{encoder_forward.2} parent=1 // loop_header_branch
      %18 = sbr.rel (%p16) target = $region8
    $region5: #{encoder_forward.2} parent=1 // loop_body
      %s20 = ssub.s32 %s15, 1
      %s21 = ssub.s32 %s15, 2
      %s22 = sadd.s32 %s15, 1
      %s23 = ssub.s32 %s15, %s22
      %p24 = scmp.eq.s32.totalorder %s23, 0
      %s26 = sadd.s32 %s25, 1
      %s27 = scalar_select %p24, %s25, %s26
      %p30 = pneg %p24
      %p31 = scmp.eq.s32.totalorder %s15, 1
      %p32 = por %p30, %p31
      %p33 = scmp.ne.s32.totalorder %s25, %s28
      %p34 = scmp.eq.s32.totalorder %s15, 0
      %p35 = por %p33, %p34
      %p36 = scmp.ne.s32.totalorder %s25, %s28
      %p37 = scmp.eq.s32.totalorder %s20, 1
      %p38 = por %p36, %p37
      %p39 = scmp.ne.s32.totalorder %s28, %s29
      %p40 = scmp.eq.s32.totalorder %s20, 0
      %p41 = por %p39, %p40
      %p42 = scmp.ne.s32.totalorder %s28, %s29
      %p43 = scmp.eq.s32.totalorder %s21, 1
      %p44 = por %p42, %p43
      %p46 = scmp.ne.s32.totalorder %s29, %s45
      %p47 = scmp.eq.s32.totalorder %s21, 0
      %p48 = por %p46, %p47
      %s50 = sadd.s32 %s49, 1
      %p53 = scmp.eq.s32.totalorder %s15, 1
      %p54 = scmp.ne.s32.totalorder %s49, %s51
      %p55 = scmp.eq.s32.totalorder %s15, 0
      %p56 = por %p54, %p55
      %p57 = scmp.ne.s32.totalorder %s49, %s51
      %p58 = scmp.eq.s32.totalorder %s20, 1
      %p59 = por %p57, %p58
      %p60 = scmp.ne.s32.totalorder %s51, %s52
      %p61 = scmp.eq.s32.totalorder %s20, 0
      %p62 = por %p60, %p61
      %p63 = scmp.ne.s32.totalorder %s51, %s52
      %p64 = scmp.eq.s32.totalorder %s21, 1
      %p65 = por %p63, %p64
      %p67 = scmp.ne.s32.totalorder %s52, %s66
      %p68 = scmp.eq.s32.totalorder %s21, 0
      %p69 = por %p67, %p68
      %s71 = sadd.s32 %s70, 1
      %p74 = scmp.eq.s32.totalorder %s15, 1
      %p75 = scmp.ne.s32.totalorder %s70, %s72
      %p76 = scmp.eq.s32.totalorder %s15, 0
      %p77 = por %p75, %p76
      %p78 = scmp.ne.s32.totalorder %s70, %s72
      %p79 = scmp.eq.s32.totalorder %s20, 1
      %p80 = por %p78, %p79
      %p81 = scmp.ne.s32.totalorder %s72, %s73
      %p82 = scmp.eq.s32.totalorder %s20, 0
      %p83 = por %p81, %p82
      %p84 = scmp.ne.s32.totalorder %s72, %s73
      %p85 = scmp.eq.s32.totalorder %s21, 1
      %p86 = por %p84, %p85
      %p88 = scmp.ne.s32.totalorder %s73, %s87
      %p89 = scmp.eq.s32.totalorder %s21, 0
      %p90 = por %p88, %p89
      %s92 = sadd.s32 %s91, 1
      %p95 = scmp.eq.s32.totalorder %s15, 1
      %p96 = scmp.ne.s32.totalorder %s91, %s93
      %p97 = scmp.eq.s32.totalorder %s15, 0
      %p98 = por %p96, %p97
      %p99 = scmp.ne.s32.totalorder %s91, %s93
      %p100 = scmp.eq.s32.totalorder %s20, 1
      %p101 = por %p99, %p100
      %p102 = scmp.ne.s32.totalorder %s93, %s94
      %p103 = scmp.eq.s32.totalorder %s20, 0
      %p104 = por %p102, %p103
      %p105 = scmp.ne.s32.totalorder %s93, %s94
      %p106 = scmp.eq.s32.totalorder %s21, 1
      %p107 = por %p105, %p106
      %p109 = scmp.ne.s32.totalorder %s94, %s108
      %p110 = scmp.eq.s32.totalorder %s21, 0
      %p111 = por %p109, %p110
      %s113 = sadd.s32 %s112, 1
      %p116 = scmp.eq.s32.totalorder %s15, 1
      %p117 = scmp.ne.s32.totalorder %s112, %s114
      %p118 = scmp.eq.s32.totalorder %s15, 0
      %p119 = por %p117, %p118
      %p120 = scmp.ne.s32.totalorder %s112, %s114
      %p121 = scmp.eq.s32.totalorder %s20, 1
      %p122 = por %p120, %p121
      %p123 = scmp.ne.s32.totalorder %s114, %s115
      %p124 = scmp.eq.s32.totalorder %s20, 0
      %p125 = por %p123, %p124
      %p126 = scmp.ne.s32.totalorder %s114, %s115
      %p127 = scmp.eq.s32.totalorder %s21, 1
      %p128 = por %p126, %p127
      %p130 = scmp.ne.s32.totalorder %s115, %s129
      %p131 = scmp.eq.s32.totalorder %s21, 0
      %p132 = por %p130, %p131
      %s133 = ssub.s32 %s15, %s22
      %p134 = scmp.eq.s32.totalorder %s133, 0
      %s136 = sadd.s32 %s135, 1
      %s137 = scalar_select %p134, %s135, %s136
      %p140 = pneg %p134
      %p141 = scmp.eq.s32.totalorder %s15, 1
      %p142 = por %p140, %p141
      %p143 = scmp.ne.s32.totalorder %s135, %s138
      %p144 = scmp.eq.s32.totalorder %s15, 0
      %p145 = por %p143, %p144
      %p146 = scmp.ne.s32.totalorder %s135, %s138
      %p147 = scmp.eq.s32.totalorder %s20, 1
      %p148 = por %p146, %p147
      %p149 = scmp.ne.s32.totalorder %s138, %s139
      %p150 = scmp.eq.s32.totalorder %s20, 0
      %p151 = por %p149, %p150
      %p152 = scmp.ne.s32.totalorder %s138, %s139
      %p153 = scmp.eq.s32.totalorder %s21, 1
      %p154 = por %p152, %p153
      %p156 = scmp.ne.s32.totalorder %s139, %s155
      %p157 = scmp.eq.s32.totalorder %s21, 0
      %p158 = por %p156, %p157
      %p159 = scmp.le.s32.totalorder 1, %s15
      %p160 = scmp.lt.s32.totalorder %s15, 3
      %p161 = pnand %p159, %p160
      %p162 = pneg %p161
      // Predicated region
      $region9: #{encoder_forward.2} parent=5 // pred_check
        _
      $region10: #{encoder_forward.2} parent=5 // pred_check_branch
        %164 = sbr.rel (%p161) target = $region12
      $region11: #{encoder_forward.2} parent=5 // pred_region
        %s165 = ssub.s32 %s15, 1
        // Predicated region
        $region13: #{encoder_forward.2} parent=11 // pred_check
          %p166 = pneg %p62
        $region14: #{encoder_forward.2} parent=11 // pred_check_branch
          %168 = sbr.rel (%p166) target = $region16
        $region15: #{encoder_forward.2} parent=11 // pred_region
          %s170 = ssub.s32 3840, 3840
          %171 = vsyncadd [#allocation6], %s170
          %s172 = sshll.u32 [#allocation5], 4
          %s173 = int_to_ptr.vmem [resolvable:$true] %s172
          %178 = dma.hbm_to_vmem [thread:$0]  %s1, 3840, %s173, [#allocation6], 64, 64, 4
        $region16: #{encoder_forward.2} parent=11 // pred_fallthru
          _
        // Predicated region
        $region17: #{encoder_forward.2} parent=11 // pred_check
          %p179 = pneg %p83
        $region18: #{encoder_forward.2} parent=11 // pred_check_branch
          %181 = sbr.rel (%p179) target = $region20
        $region19: #{encoder_forward.2} parent=11 // pred_region
          _
        $region20: #{encoder_forward.2} parent=11 // pred_fallthru
          _
        // Predicated region
        $region21: #{encoder_forward.2} parent=11 // pred_check
          %p182 = pneg %p104
        $region22: #{encoder_forward.2} parent=11 // pred_check_branch
          %184 = sbr.rel (%p182) target = $region24
        $region23: #{encoder_forward.2} parent=11 // pred_region
          _
        $region24: #{encoder_forward.2} parent=11 // pred_fallthru
          _
        // Predicated region
        $region25: #{encoder_forward.2} parent=11 // pred_check
          %p185 = pneg %p125
        $region26: #{encoder_forward.2} parent=11 // pred_check_branch
          %187 = sbr.rel (%p185) target = $region28
        $region27: #{encoder_forward.2} parent=11 // pred_region
          _
        $region28: #{encoder_forward.2} parent=11 // pred_fallthru
          _
      $region12: #{encoder_forward.2} parent=5 // pred_fallthru
        _
      %p188 = scmp.lt.s32.totalorder %s15, 2
      // Predicated region
      $region29: #{encoder_forward.2} parent=5 // pred_check
        %p189 = pneg %p188
      $region30: #{encoder_forward.2} parent=5 // pred_check_branch
        %191 = sbr.rel (%p189) target = $region32
      $region31: #{encoder_forward.2} parent=5 // pred_region
        // Predicated region
        $region33: #{encoder_forward.2} parent=31 // pred_check
          %p192 = pneg %p35
        $region34: #{encoder_forward.2} parent=31 // pred_check_branch
          %194 = sbr.rel (%p192) target = $region36
        $region35: #{encoder_forward.2} parent=31 // pred_region
          %s195 = sand.u32 %s25, 1
          %s196 = scalar_lea.sflag [#allocation4], %s195
          %s197 = sand.u32 %s25, 1
          %s198 = smul.addr %s197, 16
          %s199 = scalar_lea.vmem [#allocation3], %s198
          %s201 = ssub.s32 256, 256
          %202 = vsyncadd %s196, %s201
          %s203 = smul.addr %s15, 2
          %s204 = smul.addr %s203, 128
          %s205 = scalar_lea.hbm %s0, %s204
          %s206 = sshll.u32 %s199, 4
          %s207 = int_to_ptr.vmem [resolvable:$true] %s206
          %212 = dma.hbm_to_vmem [thread:$0]  %s205, 256, %s207, %s196, 128, 128, 8
        $region36: #{encoder_forward.2} parent=31 // pred_fallthru
          _
      $region32: #{encoder_forward.2} parent=5 // pred_fallthru
        _
      %p213 = scmp.le.s32.totalorder 1, %s15
      %p214 = scmp.lt.s32.totalorder %s15, 3
      %p215 = pnand %p213, %p214
      %p216 = pneg %p215
      // Predicated region
      $region37: #{encoder_forward.2} parent=5 // pred_check
        _
      $region38: #{encoder_forward.2} parent=5 // pred_check_branch
        %218 = sbr.rel (%p215) target = $region40
      $region39: #{encoder_forward.2} parent=5 // pred_region
        %s219 = ssub.s32 %s15, 1
        %s220 = sand.u32 %s28, 1
        %s221 = scalar_lea.sflag [#allocation4], %s220
        %s222 = sand.u32 %s28, 1
        %s223 = smul.addr %s222, 16
        %s224 = scalar_lea.vmem [#allocation3], %s223
        // Predicated region
        $region41: #{encoder_forward.2} parent=39 // pred_check
          %p225 = pneg %p41
        $region42: #{encoder_forward.2} parent=39 // pred_check_branch
          %227 = sbr.rel (%p225) target = $region44
        $region43: #{encoder_forward.2} parent=39 // pred_region
          %228 = dma.done %s221, 256
        $region44: #{encoder_forward.2} parent=39 // pred_fallthru
          _
        // Predicated region
        $region45: #{encoder_forward.2} parent=39 // pred_check
          %p229 = pneg %p62
        $region46: #{encoder_forward.2} parent=39 // pred_check_branch
          %231 = sbr.rel (%p229) target = $region48
        $region47: #{encoder_forward.2} parent=39 // pred_region
          %232 = dma.done [#allocation6], 3840
        $region48: #{encoder_forward.2} parent=39 // pred_fallthru
          _
        %s233 = sand.u32 %s28, 1
        %s234 = scalar_lea.sflag [#allocation4], %s233
        %s235 = sand.u32 %s28, 1
        %s236 = smul.addr %s235, 16
        %s237 = scalar_lea.vmem [#allocation3], %s236
        %p238 = pneg %p41
        %p239 = pneg %p38
        %p240 = pneg %p62
        %p241 = pneg %p59
        %p242 = pneg %p83
        %p243 = pneg %p80
        %p244 = pneg %p104
        %p245 = pneg %p101
        %p246 = pneg %p125
        %p247 = pneg %p122
        %p248 = pneg %p151
        %p249 = pneg %p148
        %s250 = sand.u32 %s138, 1
        %s251 = sand.u32 %s138, 1
        %s252 = smul.addr %s251, 8
        %s253 = scalar_lea.vmem [#allocation7], %s252
        %vm255 = vcmask 261120
        %256 = vst.msk [vmem:[#allocation2] sm:$0xff] %vm255, 0.0
        %257 = vst.msk [vmem:[#allocation2 + $0x18] sm:$0xff] %vm255, 0.0
        %v258 = vld [vmem:[%s224] sm:$0xff]
        %v259 = vld [vmem:[%s224 + $0x8] sm:$0xff]
        %260 = vst.msk [vmem:[#allocation2 + $0x8] sm:$0xff] %vm255, %v258
        %261 = vst.msk [vmem:[#allocation2 + $0x10] sm:$0xff] %vm255, %v259
        %v262 = vld [vmem:[#allocation2 + $0x6] sm:$0xff]
        %v263 = vld [vmem:[#allocation2 + $0xe] sm:$0xff]
        %v264 = vpack.c.bf16 %v263, %v262
        %v265 = vld [vmem:[#allocation5] sm:$0xf]
        %v266 = vld [vmem:[#allocation5 + $0x4] sm:$0xf]
        %v267 = vld [vmem:[#allocation5 + $0x8] sm:$0xf]
        %v268 = vld [vmem:[#allocation5 + $0xc] sm:$0xf]
        %v269 = vld [vmem:[#allocation2 + $0x7] sm:$0xff]
        %v270 = vld [vmem:[#allocation2 + $0xf] sm:$0xff]
        %v271 = vpack.c.bf16 %v270, %v269
        %s272 = scalar_lea.vmem [#allocation5], 16
        %v273 = vld [vmem:[%s272] sm:$0xf]
        %v274 = vld [vmem:[%s272 + $0x4] sm:$0xf]
        %v275 = vld [vmem:[%s272 + $0x8] sm:$0xf]
        %v276 = vld [vmem:[%s272 + $0xc] sm:$0xf]
        %v281 = vunpack.c.l.b16 %v273
        %v282 = vunpack.c.l.b16 %v274
        %v283 = vunpack.c.l.b16 %v275
        %v284 = vunpack.c.l.b16 %v276
        %v285 = vpack.c.b16 %v282, %v281
        %v286 = vpack.c.b16 %v284, %v283
        %v290 = vsel %vm255, %v271, 0
        %292 = vmatprep.subr.bf16.mxu0 0
        %293 = vmatpush1.bf16.msra.mxu0 %v285
        %294 = vmatprep.subr.bf16.mxu0 0
        %295 = vmatpush1.bf16.msra.mxu0 %v286
        %296 = vmatprep.subr.bf16.mxu0 0
        %297 = vmatpush1.bf16.msra.mxu0 0
        %298 = vmatprep.subr.bf16.mxu0 0
        %299 = vmatpush1.bf16.msra.mxu0 0
        %300 = vmatprep.subr.bf16.mxu0 0
        %301 = vmatpush1.bf16.msra.mxu0 0
        %302 = vmatprep.subr.bf16.mxu0 0
        %303 = vmatpush1.bf16.msra.mxu0 0
        %304 = vmatprep.subr.bf16.mxu0 0
        %305 = vmatpush1.bf16.msra.mxu0 0
        %306 = vmatprep.subr.bf16.mxu0 0
        %307 = vmatpush1.bf16.msra.mxu0 0
        %308 = vmatprep.subr.bf16.mxu0 0
        %309 = vmatpush1.bf16.msra.mxu0 0
        %310 = vmatprep.subr.bf16.mxu0 0
        %311 = vmatpush1.bf16.msra.mxu0 0
        %312 = vmatprep.subr.bf16.mxu0 0
        %313 = vmatpush1.bf16.msra.mxu0 0
        %314 = vmatprep.subr.bf16.mxu0 0
        %315 = vmatpush1.bf16.msra.mxu0 0
        %316 = vmatprep.subr.bf16.mxu0 0
        %317 = vmatpush1.bf16.msra.mxu0 0
        %318 = vmatprep.subr.bf16.mxu0 0
        %319 = vmatpush1.bf16.msra.mxu0 0
        %320 = vmatprep.subr.bf16.mxu0 0
        %321 = vmatpush1.bf16.msra.mxu0 0
        %322 = vmatprep.subr.bf16.mxu0 0
        %323 = vmatpush1.bf16.msra.mxu0 0
        %324 = vmatprep.mubr.bf16.mxu0 0
        %325 = vmatmul.mubr.bf16.gmra.mrb[0].mxu0 %v290
        %v326 = vpop.f32.mrb[0].mxu0
        %v327 = vadd.f32 0.0, %v326
        %v328 = vpop.f32.mrb[0].mxu0
        %v329 = vpop.f32.mrb[0].mxu0
        %v330 = vadd.f32 0.0, %v329
        %v331 = vpop.f32.mrb[0].mxu0
        %332 = vdwg.mxu0
        %v337 = vunpack.c.l.b16 %v265
        %v338 = vunpack.c.l.b16 %v266
        %v339 = vunpack.c.l.b16 %v267
        %v340 = vunpack.c.l.b16 %v268
        %v341 = vpack.c.b16 %v338, %v337
        %v342 = vpack.c.b16 %v340, %v339
        %v346 = vsel %vm255, %v264, 0
        %348 = vmatprep.subr.bf16.mxu0 0
        %349 = vmatpush1.bf16.msra.mxu0 %v341
        %350 = vmatprep.subr.bf16.mxu0 0
        %351 = vmatpush1.bf16.msra.mxu0 %v342
        %352 = vmatprep.subr.bf16.mxu0 0
        %353 = vmatpush1.bf16.msra.mxu0 0
        %354 = vmatprep.subr.bf16.mxu0 0
        %355 = vmatpush1.bf16.msra.mxu0 0
        %356 = vmatprep.subr.bf16.mxu0 0
        %357 = vmatpush1.bf16.msra.mxu0 0
        %358 = vmatprep.subr.bf16.mxu0 0
        %359 = vmatpush1.bf16.msra.mxu0 0
        %360 = vmatprep.subr.bf16.mxu0 0
        %361 = vmatpush1.bf16.msra.mxu0 0
        %362 = vmatprep.subr.bf16.mxu0 0
        %363 = vmatpush1.bf16.msra.mxu0 0
        %364 = vmatprep.subr.bf16.mxu0 0
        %365 = vmatpush1.bf16.msra.mxu0 0
        %366 = vmatprep.subr.bf16.mxu0 0
        %367 = vmatpush1.bf16.msra.mxu0 0
        %368 = vmatprep.subr.bf16.mxu0 0
        %369 = vmatpush1.bf16.msra.mxu0 0
        %370 = vmatprep.subr.bf16.mxu0 0
        %371 = vmatpush1.bf16.msra.mxu0 0
        %372 = vmatprep.subr.bf16.mxu0 0
        %373 = vmatpush1.bf16.msra.mxu0 0
        %374 = vmatprep.subr.bf16.mxu0 0
        %375 = vmatpush1.bf16.msra.mxu0 0
        %376 = vmatprep.subr.bf16.mxu0 0
        %377 = vmatpush1.bf16.msra.mxu0 0
        %378 = vmatprep.subr.bf16.mxu0 0
        %379 = vmatpush1.bf16.msra.mxu0 0
        %380 = vmatprep.mubr.bf16.mxu0 0
        %381 = vmatmul.mubr.bf16.gmra.mrb[0].mxu0 %v346
        %v382 = vpop.f32.mrb[0].mxu0
        %v383 = vadd.f32 %v327, %v382
        %v384 = vpop.f32.mrb[0].mxu0
        %v385 = vpop.f32.mrb[0].mxu0
        %v386 = vadd.f32 %v330, %v385
        %v387 = vpop.f32.mrb[0].mxu0
        %388 = vdwg.mxu0
        %v389 = vld [vmem:[#allocation2 + $0x8] sm:$0xff]
        %v390 = vld [vmem:[#allocation2 + $0x10] sm:$0xff]
        %v391 = vpack.c.bf16 %v390, %v389
        %s392 = scalar_lea.vmem [#allocation5], 32
        %v393 = vld [vmem:[%s392] sm:$0xf]
        %v394 = vld [vmem:[%s392 + $0x4] sm:$0xf]
        %v395 = vld [vmem:[%s392 + $0x8] sm:$0xf]
        %v396 = vld [vmem:[%s392 + $0xc] sm:$0xf]
        %v401 = vunpack.c.l.b16 %v393
        %v402 = vunpack.c.l.b16 %v394
        %v403 = vunpack.c.l.b16 %v395
        %v404 = vunpack.c.l.b16 %v396
        %v405 = vpack.c.b16 %v402, %v401
        %v406 = vpack.c.b16 %v404, %v403
        %v410 = vsel %vm255, %v391, 0
        %412 = vmatprep.subr.bf16.mxu0 0
        %413 = vmatpush1.bf16.msra.mxu0 %v405
        %414 = vmatprep.subr.bf16.mxu0 0
        %415 = vmatpush1.bf16.msra.mxu0 %v406
        %416 = vmatprep.subr.bf16.mxu0 0
        %417 = vmatpush1.bf16.msra.mxu0 0
        %418 = vmatprep.subr.bf16.mxu0 0
        %419 = vmatpush1.bf16.msra.mxu0 0
        %420 = vmatprep.subr.bf16.mxu0 0
        %421 = vmatpush1.bf16.msra.mxu0 0
        %422 = vmatprep.subr.bf16.mxu0 0
        %423 = vmatpush1.bf16.msra.mxu0 0
        %424 = vmatprep.subr.bf16.mxu0 0
        %425 = vmatpush1.bf16.msra.mxu0 0
        %426 = vmatprep.subr.bf16.mxu0 0
        %427 = vmatpush1.bf16.msra.mxu0 0
        %428 = vmatprep.subr.bf16.mxu0 0
        %429 = vmatpush1.bf16.msra.mxu0 0
        %430 = vmatprep.subr.bf16.mxu0 0
        %431 = vmatpush1.bf16.msra.mxu0 0
        %432 = vmatprep.subr.bf16.mxu0 0
        %433 = vmatpush1.bf16.msra.mxu0 0
        %434 = vmatprep.subr.bf16.mxu0 0
        %435 = vmatpush1.bf16.msra.mxu0 0
        %436 = vmatprep.subr.bf16.mxu0 0
        %437 = vmatpush1.bf16.msra.mxu0 0
        %438 = vmatprep.subr.bf16.mxu0 0
        %439 = vmatpush1.bf16.msra.mxu0 0
        %440 = vmatprep.subr.bf16.mxu0 0
        %441 = vmatpush1.bf16.msra.mxu0 0
        %442 = vmatprep.subr.bf16.mxu0 0
        %443 = vmatpush1.bf16.msra.mxu0 0
        %444 = vmatprep.mubr.bf16.mxu0 0
        %445 = vmatmul.mubr.bf16.gmra.mrb[0].mxu0 %v410
        %v446 = vpop.f32.mrb[0].mxu0
        %v447 = vadd.f32 0.0, %v446
        %v448 = vpop.f32.mrb[0].mxu0
        %v449 = vpop.f32.mrb[0].mxu0
        %v450 = vadd.f32 0.0, %v449
        %v451 = vpop.f32.mrb[0].mxu0
        %452 = vdwg.mxu0
        %v453 = vadd.f32 %v383, %v447
        %v454 = vadd.f32 %v386, %v450
        %v455 = vld [vmem:[#allocation2 + $0x9] sm:$0xff]
        %v456 = vld [vmem:[#allocation2 + $0x11] sm:$0xff]
        %v457 = vpack.c.bf16 %v456, %v455
        %s458 = scalar_lea.vmem [#allocation5], 48
        %v459 = vld [vmem:[%s458] sm:$0xf]
        %v460 = vld [vmem:[%s458 + $0x4] sm:$0xf]
        %v461 = vld [vmem:[%s458 + $0x8] sm:$0xf]
        %v462 = vld [vmem:[%s458 + $0xc] sm:$0xf]
        %v467 = vunpack.c.l.b16 %v459
        %v468 = vunpack.c.l.b16 %v460
        %v469 = vunpack.c.l.b16 %v461
        %v470 = vunpack.c.l.b16 %v462
        %v471 = vpack.c.b16 %v468, %v467
        %v472 = vpack.c.b16 %v470, %v469
        %v476 = vsel %vm255, %v457, 0
        %478 = vmatprep.subr.bf16.mxu0 0
        %479 = vmatpush1.bf16.msra.mxu0 %v471
        %480 = vmatprep.subr.bf16.mxu0 0
        %481 = vmatpush1.bf16.msra.mxu0 %v472
        %482 = vmatprep.subr.bf16.mxu0 0
        %483 = vmatpush1.bf16.msra.mxu0 0
        %484 = vmatprep.subr.bf16.mxu0 0
        %485 = vmatpush1.bf16.msra.mxu0 0
        %486 = vmatprep.subr.bf16.mxu0 0
        %487 = vmatpush1.bf16.msra.mxu0 0
        %488 = vmatprep.subr.bf16.mxu0 0
        %489 = vmatpush1.bf16.msra.mxu0 0
        %490 = vmatprep.subr.bf16.mxu0 0
        %491 = vmatpush1.bf16.msra.mxu0 0
        %492 = vmatprep.subr.bf16.mxu0 0
        %493 = vmatpush1.bf16.msra.mxu0 0
        %494 = vmatprep.subr.bf16.mxu0 0
        %495 = vmatpush1.bf16.msra.mxu0 0
        %496 = vmatprep.subr.bf16.mxu0 0
        %497 = vmatpush1.bf16.msra.mxu0 0
        %498 = vmatprep.subr.bf16.mxu0 0
        %499 = vmatpush1.bf16.msra.mxu0 0
        %500 = vmatprep.subr.bf16.mxu0 0
        %501 = vmatpush1.bf16.msra.mxu0 0
        %502 = vmatprep.subr.bf16.mxu0 0
        %503 = vmatpush1.bf16.msra.mxu0 0
        %504 = vmatprep.subr.bf16.mxu0 0
        %505 = vmatpush1.bf16.msra.mxu0 0
        %506 = vmatprep.subr.bf16.mxu0 0
        %507 = vmatpush1.bf16.msra.mxu0 0
        %508 = vmatprep.subr.bf16.mxu0 0
        %509 = vmatpush1.bf16.msra.mxu0 0
        %510 = vmatprep.mubr.bf16.mxu0 0
        %511 = vmatmul.mubr.bf16.gmra.mrb[0].mxu0 %v476
        %v512 = vpop.f32.mrb[0].mxu0
        %v513 = vadd.f32 0.0, %v512
        %v514 = vpop.f32.mrb[0].mxu0
        %v515 = vpop.f32.mrb[0].mxu0
        %v516 = vadd.f32 0.0, %v515
        %v517 = vpop.f32.mrb[0].mxu0
        %518 = vdwg.mxu0
        %v519 = vadd.f32 %v453, %v513
        %v520 = vadd.f32 %v454, %v516
        %v521 = vld [vmem:[#allocation2 + $0xa] sm:$0xff]
        %v522 = vld [vmem:[#allocation2 + $0x12] sm:$0xff]
        %v523 = vpack.c.bf16 %v522, %v521
        %s524 = scalar_lea.vmem [#allocation5], 64
        %v525 = vld [vmem:[%s524] sm:$0xf]
        %v526 = vld [vmem:[%s524 + $0x4] sm:$0xf]
        %v527 = vld [vmem:[%s524 + $0x8] sm:$0xf]
        %v528 = vld [vmem:[%s524 + $0xc] sm:$0xf]
        %v533 = vunpack.c.l.b16 %v525
        %v534 = vunpack.c.l.b16 %v526
        %v535 = vunpack.c.l.b16 %v527
        %v536 = vunpack.c.l.b16 %v528
        %v537 = vpack.c.b16 %v534, %v533
        %v538 = vpack.c.b16 %v536, %v535
        %v542 = vsel %vm255, %v523, 0
        %544 = vmatprep.subr.bf16.mxu0 0
        %545 = vmatpush1.bf16.msra.mxu0 %v537
        %546 = vmatprep.subr.bf16.mxu0 0
        %547 = vmatpush1.bf16.msra.mxu0 %v538
        %548 = vmatprep.subr.bf16.mxu0 0
        %549 = vmatpush1.bf16.msra.mxu0 0
        %550 = vmatprep.subr.bf16.mxu0 0
        %551 = vmatpush1.bf16.msra.mxu0 0
        %552 = vmatprep.subr.bf16.mxu0 0
        %553 = vmatpush1.bf16.msra.mxu0 0
        %554 = vmatprep.subr.bf16.mxu0 0
        %555 = vmatpush1.bf16.msra.mxu0 0
        %556 = vmatprep.subr.bf16.mxu0 0
        %557 = vmatpush1.bf16.msra.mxu0 0
        %558 = vmatprep.subr.bf16.mxu0 0
        %559 = vmatpush1.bf16.msra.mxu0 0
        %560 = vmatprep.subr.bf16.mxu0 0
        %561 = vmatpush1.bf16.msra.mxu0 0
        %562 = vmatprep.subr.bf16.mxu0 0
        %563 = vmatpush1.bf16.msra.mxu0 0
        %564 = vmatprep.subr.bf16.mxu0 0
        %565 = vmatpush1.bf16.msra.mxu0 0
        %566 = vmatprep.subr.bf16.mxu0 0
        %567 = vmatpush1.bf16.msra.mxu0 0
        %568 = vmatprep.subr.bf16.mxu0 0
        %569 = vmatpush1.bf16.msra.mxu0 0
        %570 = vmatprep.subr.bf16.mxu0 0
        %571 = vmatpush1.bf16.msra.mxu0 0
        %572 = vmatprep.subr.bf16.mxu0 0
        %573 = vmatpush1.bf16.msra.mxu0 0
        %574 = vmatprep.subr.bf16.mxu0 0
        %575 = vmatpush1.bf16.msra.mxu0 0
        %576 = vmatprep.mubr.bf16.mxu0 0
        %577 = vmatmul.mubr.bf16.gmra.mrb[0].mxu0 %v542
        %v578 = vpop.f32.mrb[0].mxu0
        %v579 = vadd.f32 0.0, %v578
        %v580 = vpop.f32.mrb[0].mxu0
        %v581 = vpop.f32.mrb[0].mxu0
        %v582 = vadd.f32 0.0, %v581
        %v583 = vpop.f32.mrb[0].mxu0
        %584 = vdwg.mxu0
        %v585 = vadd.f32 %v519, %v579
        %v586 = vadd.f32 %v520, %v582
        %v587 = vld [vmem:[%s2] sm:$0x1]
        %v589 = vlaneseq
        %v590 = vshrl.u32 %v589, 7
        %v591 = vsub.s32 0, %v590
        %v592 = vrot.slane %v587, %v591
        %v594 = vadd.f32 %v585, %v592
        %v595 = vadd.f32 %v586, %v592
        %v596 = vmax.f32 %v594, 0.0
        %v597 = vmax.f32 %v595, 0.0
        %598 = vst.msk [vmem:[#allocation2 + $0x8] sm:$0xff] %vm255, %v596
        %599 = vst.msk [vmem:[#allocation2 + $0x10] sm:$0xff] %vm255, %v597
        %v600 = vld [vmem:[#allocation2 + $0x6] sm:$0xff]
        %v601 = vld [vmem:[#allocation2 + $0xe] sm:$0xff]
        %v602 = vpack.c.bf16 %v601, %v600
        %s603 = scalar_lea.vmem [#allocation5], 80
        %v604 = vld [vmem:[%s603] sm:$0xf]
        %v605 = vld [vmem:[%s603 + $0x4] sm:$0xf]
        %v606 = vld [vmem:[%s603 + $0x8] sm:$0xf]
        %v607 = vld [vmem:[%s603 + $0xc] sm:$0xf]
        %v608 = vld [vmem:[#allocation2 + $0x7] sm:$0xff]
        %v609 = vld [vmem:[#allocation2 + $0xf] sm:$0xff]
        %v610 = vpack.c.bf16 %v609, %v608
        %s611 = scalar_lea.vmem [#allocation5], 96
        %v612 = vld [vmem:[%s611] sm:$0xf]
        %v613 = vld [vmem:[%s611 + $0x4] sm:$0xf]
        %v614 = vld [vmem:[%s611 + $0x8] sm:$0xf]
        %v615 = vld [vmem:[%s611 + $0xc] sm:$0xf]
        %v620 = vunpack.c.l.b16 %v612
        %v621 = vunpack.c.l.b16 %v613
        %v622 = vunpack.c.l.b16 %v614
        %v623 = vunpack.c.l.b16 %v615
        %v624 = vpack.c.b16 %v621, %v620
        %v625 = vpack.c.b16 %v623, %v622
        %v629 = vsel %vm255, %v610, 0
        %631 = vmatprep.subr.bf16.mxu0 0
        %632 = vmatpush1.bf16.msra.mxu0 %v624
        %633 = vmatprep.subr.bf16.mxu0 0
        %634 = vmatpush1.bf16.msra.mxu0 %v625
        %635 = vmatprep.subr.bf16.mxu0 0
        %636 = vmatpush1.bf16.msra.mxu0 0
        %637 = vmatprep.subr.bf16.mxu0 0
        %638 = vmatpush1.bf16.msra.mxu0 0
        %639 = vmatprep.subr.bf16.mxu0 0
        %640 = vmatpush1.bf16.msra.mxu0 0
        %641 = vmatprep.subr.bf16.mxu0 0
        %642 = vmatpush1.bf16.msra.mxu0 0
        %643 = vmatprep.subr.bf16.mxu0 0
        %644 = vmatpush1.bf16.msra.mxu0 0
        %645 = vmatprep.subr.bf16.mxu0 0
        %646 = vmatpush1.bf16.msra.mxu0 0
        %647 = vmatprep.subr.bf16.mxu0 0
        %648 = vmatpush1.bf16.msra.mxu0 0
        %649 = vmatprep.subr.bf16.mxu0 0
        %650 = vmatpush1.bf16.msra.mxu0 0
        %651 = vmatprep.subr.bf16.mxu0 0
        %652 = vmatpush1.bf16.msra.mxu0 0
        %653 = vmatprep.subr.bf16.mxu0 0
        %654 = vmatpush1.bf16.msra.mxu0 0
        %655 = vmatprep.subr.bf16.mxu0 0
        %656 = vmatpush1.bf16.msra.mxu0 0
        %657 = vmatprep.subr.bf16.mxu0 0
        %658 = vmatpush1.bf16.msra.mxu0 0
        %659 = vmatprep.subr.bf16.mxu0 0
        %660 = vmatpush1.bf16.msra.mxu0 0
        %661 = vmatprep.subr.bf16.mxu0 0
        %662 = vmatpush1.bf16.msra.mxu0 0
        %663 = vmatprep.mubr.bf16.mxu0 0
        %664 = vmatmul.mubr.bf16.gmra.mrb[0].mxu0 %v629
        %v665 = vpop.f32.mrb[0].mxu0
        %v666 = vadd.f32 0.0, %v665
        %v667 = vpop.f32.mrb[0].mxu0
        %v668 = vpop.f32.mrb[0].mxu0
        %v669 = vadd.f32 0.0, %v668
        %v670 = vpop.f32.mrb[0].mxu0
        %671 = vdwg.mxu0
        %v676 = vunpack.c.l.b16 %v604
        %v677 = vunpack.c.l.b16 %v605
        %v678 = vunpack.c.l.b16 %v606
        %v679 = vunpack.c.l.b16 %v607
        %v680 = vpack.c.b16 %v677, %v676
        %v681 = vpack.c.b16 %v679, %v678
        %v685 = vsel %vm255, %v602, 0
        %687 = vmatprep.subr.bf16.mxu0 0
        %688 = vmatpush1.bf16.msra.mxu0 %v680
        %689 = vmatprep.subr.bf16.mxu0 0
        %690 = vmatpush1.bf16.msra.mxu0 %v681
        %691 = vmatprep.subr.bf16.mxu0 0
        %692 = vmatpush1.bf16.msra.mxu0 0
        %693 = vmatprep.subr.bf16.mxu0 0
        %694 = vmatpush1.bf16.msra.mxu0 0
        %695 = vmatprep.subr.bf16.mxu0 0
        %696 = vmatpush1.bf16.msra.mxu0 0
        %697 = vmatprep.subr.bf16.mxu0 0
        %698 = vmatpush1.bf16.msra.mxu0 0
        %699 = vmatprep.subr.bf16.mxu0 0
        %700 = vmatpush1.bf16.msra.mxu0 0
        %701 = vmatprep.subr.bf16.mxu0 0
        %702 = vmatpush1.bf16.msra.mxu0 0
        %703 = vmatprep.subr.bf16.mxu0 0
        %704 = vmatpush1.bf16.msra.mxu0 0
        %705 = vmatprep.subr.bf16.mxu0 0
        %706 = vmatpush1.bf16.msra.mxu0 0
        %707 = vmatprep.subr.bf16.mxu0 0
        %708 = vmatpush1.bf16.msra.mxu0 0
        %709 = vmatprep.subr.bf16.mxu0 0
        %710 = vmatpush1.bf16.msra.mxu0 0
        %711 = vmatprep.subr.bf16.mxu0 0
        %712 = vmatpush1.bf16.msra.mxu0 0
        %713 = vmatprep.subr.bf16.mxu0 0
        %714 = vmatpush1.bf16.msra.mxu0 0
        %715 = vmatprep.subr.bf16.mxu0 0
        %716 = vmatpush1.bf16.msra.mxu0 0
        %717 = vmatprep.subr.bf16.mxu0 0
        %718 = vmatpush1.bf16.msra.mxu0 0
        %719 = vmatprep.mubr.bf16.mxu0 0
        %720 = vmatmul.mubr.bf16.gmra.mrb[0].mxu0 %v685
        %v721 = vpop.f32.mrb[0].mxu0
        %v722 = vadd.f32 %v666, %v721
        %v723 = vpop.f32.mrb[0].mxu0
        %v724 = vpop.f32.mrb[0].mxu0
        %v725 = vadd.f32 %v669, %v724
        %v726 = vpop.f32.mrb[0].mxu0
        %727 = vdwg.mxu0
        %v728 = vld [vmem:[#allocation2 + $0x8] sm:$0xff]
        %v729 = vld [vmem:[#allocation2 + $0x10] sm:$0xff]
        %v730 = vpack.c.bf16 %v729, %v728
        %s731 = scalar_lea.vmem [#allocation5], 112
        %v732 = vld [vmem:[%s731] sm:$0xf]
        %v733 = vld [vmem:[%s731 + $0x4] sm:$0xf]
        %v734 = vld [vmem:[%s731 + $0x8] sm:$0xf]
        %v735 = vld [vmem:[%s731 + $0xc] sm:$0xf]
        %v740 = vunpack.c.l.b16 %v732
        %v741 = vunpack.c.l.b16 %v733
        %v742 = vunpack.c.l.b16 %v734
        %v743 = vunpack.c.l.b16 %v735
        %v744 = vpack.c.b16 %v741, %v740
        %v745 = vpack.c.b16 %v743, %v742
        %v749 = vsel %vm255, %v730, 0
        %751 = vmatprep.subr.bf16.mxu0 0
        %752 = vmatpush1.bf16.msra.mxu0 %v744
        %753 = vmatprep.subr.bf16.mxu0 0
        %754 = vmatpush1.bf16.msra.mxu0 %v745
        %755 = vmatprep.subr.bf16.mxu0 0
        %756 = vmatpush1.bf16.msra.mxu0 0
        %757 = vmatprep.subr.bf16.mxu0 0
        %758 = vmatpush1.bf16.msra.mxu0 0
        %759 = vmatprep.subr.bf16.mxu0 0
        %760 = vmatpush1.bf16.msra.mxu0 0
        %761 = vmatprep.subr.bf16.mxu0 0
        %762 = vmatpush1.bf16.msra.mxu0 0
        %763 = vmatprep.subr.bf16.mxu0 0
        %764 = vmatpush1.bf16.msra.mxu0 0
        %765 = vmatprep.subr.bf16.mxu0 0
        %766 = vmatpush1.bf16.msra.mxu0 0
        %767 = vmatprep.subr.bf16.mxu0 0
        %768 = vmatpush1.bf16.msra.mxu0 0
        %769 = vmatprep.subr.bf16.mxu0 0
        %770 = vmatpush1.bf16.msra.mxu0 0
        %771 = vmatprep.subr.bf16.mxu0 0
        %772 = vmatpush1.bf16.msra.mxu0 0
        %773 = vmatprep.subr.bf16.mxu0 0
        %774 = vmatpush1.bf16.msra.mxu0 0
        %775 = vmatprep.subr.bf16.mxu0 0
        %776 = vmatpush1.bf16.msra.mxu0 0
        %777 = vmatprep.subr.bf16.mxu0 0
        %778 = vmatpush1.bf16.msra.mxu0 0
        %779 = vmatprep.subr.bf16.mxu0 0
        %780 = vmatpush1.bf16.msra.mxu0 0
        %781 = vmatprep.subr.bf16.mxu0 0
        %782 = vmatpush1.bf16.msra.mxu0 0
        %783 = vmatprep.mubr.bf16.mxu0 0
        %784 = vmatmul.mubr.bf16.gmra.mrb[0].mxu0 %v749
        %v785 = vpop.f32.mrb[0].mxu0
        %v786 = vadd.f32 0.0, %v785
        %v787 = vpop.f32.mrb[0].mxu0
        %v788 = vpop.f32.mrb[0].mxu0
        %v789 = vadd.f32 0.0, %v788
        %v790 = vpop.f32.mrb[0].mxu0
        %791 = vdwg.mxu0
        %v792 = vadd.f32 %v722, %v786
        %v793 = vadd.f32 %v725, %v789
        %v794 = vld [vmem:[#allocation2 + $0x9] sm:$0xff]
        %v795 = vld [vmem:[#allocation2 + $0x11] sm:$0xff]
        %v796 = vpack.c.bf16 %v795, %v794
        %s797 = scalar_lea.vmem [#allocation5], 128
        %v798 = vld [vmem:[%s797] sm:$0xf]
        %v799 = vld [vmem:[%s797 + $0x4] sm:$0xf]
        %v800 = vld [vmem:[%s797 + $0x8] sm:$0xf]
        %v801 = vld [vmem:[%s797 + $0xc] sm:$0xf]
        %v806 = vunpack.c.l.b16 %v798
        %v807 = vunpack.c.l.b16 %v799
        %v808 = vunpack.c.l.b16 %v800
        %v809 = vunpack.c.l.b16 %v801
        %v810 = vpack.c.b16 %v807, %v806
        %v811 = vpack.c.b16 %v809, %v808
        %v815 = vsel %vm255, %v796, 0
        %817 = vmatprep.subr.bf16.mxu0 0
        %818 = vmatpush1.bf16.msra.mxu0 %v810
        %819 = vmatprep.subr.bf16.mxu0 0
        %820 = vmatpush1.bf16.msra.mxu0 %v811
        %821 = vmatprep.subr.bf16.mxu0 0
        %822 = vmatpush1.bf16.msra.mxu0 0
        %823 = vmatprep.subr.bf16.mxu0 0
        %824 = vmatpush1.bf16.msra.mxu0 0
        %825 = vmatprep.subr.bf16.mxu0 0
        %826 = vmatpush1.bf16.msra.mxu0 0
        %827 = vmatprep.subr.bf16.mxu0 0
        %828 = vmatpush1.bf16.msra.mxu0 0
        %829 = vmatprep.subr.bf16.mxu0 0
        %830 = vmatpush1.bf16.msra.mxu0 0
        %831 = vmatprep.subr.bf16.mxu0 0
        %832 = vmatpush1.bf16.msra.mxu0 0
        %833 = vmatprep.subr.bf16.mxu0 0
        %834 = vmatpush1.bf16.msra.mxu0 0
        %835 = vmatprep.subr.bf16.mxu0 0
        %836 = vmatpush1.bf16.msra.mxu0 0
        %837 = vmatprep.subr.bf16.mxu0 0
        %838 = vmatpush1.bf16.msra.mxu0 0
        %839 = vmatprep.subr.bf16.mxu0 0
        %840 = vmatpush1.bf16.msra.mxu0 0
        %841 = vmatprep.subr.bf16.mxu0 0
        %842 = vmatpush1.bf16.msra.mxu0 0
        %843 = vmatprep.subr.bf16.mxu0 0
        %844 = vmatpush1.bf16.msra.mxu0 0
        %845 = vmatprep.subr.bf16.mxu0 0
        %846 = vmatpush1.bf16.msra.mxu0 0
        %847 = vmatprep.subr.bf16.mxu0 0
        %848 = vmatpush1.bf16.msra.mxu0 0
        %849 = vmatprep.mubr.bf16.mxu0 0
        %850 = vmatmul.mubr.bf16.gmra.mrb[0].mxu0 %v815
        %v851 = vpop.f32.mrb[0].mxu0
        %v852 = vadd.f32 0.0, %v851
        %v853 = vpop.f32.mrb[0].mxu0
        %v854 = vpop.f32.mrb[0].mxu0
        %v855 = vadd.f32 0.0, %v854
        %v856 = vpop.f32.mrb[0].mxu0
        %857 = vdwg.mxu0
        %v858 = vadd.f32 %v792, %v852
        %v859 = vadd.f32 %v793, %v855
        %v860 = vld [vmem:[#allocation2 + $0xa] sm:$0xff]
        %v861 = vld [vmem:[#allocation2 + $0x12] sm:$0xff]
        %v862 = vpack.c.bf16 %v861, %v860
        %s863 = scalar_lea.vmem [#allocation5], 144
        %v864 = vld [vmem:[%s863] sm:$0xf]
        %v865 = vld [vmem:[%s863 + $0x4] sm:$0xf]
        %v866 = vld [vmem:[%s863 + $0x8] sm:$0xf]
        %v867 = vld [vmem:[%s863 + $0xc] sm:$0xf]
        %v872 = vunpack.c.l.b16 %v864
        %v873 = vunpack.c.l.b16 %v865
        %v874 = vunpack.c.l.b16 %v866
        %v875 = vunpack.c.l.b16 %v867
        %v876 = vpack.c.b16 %v873, %v872
        %v877 = vpack.c.b16 %v875, %v874
        %v881 = vsel %vm255, %v862, 0
        %883 = vmatprep.subr.bf16.mxu0 0
        %884 = vmatpush1.bf16.msra.mxu0 %v876
        %885 = vmatprep.subr.bf16.mxu0 0
        %886 = vmatpush1.bf16.msra.mxu0 %v877
        %887 = vmatprep.subr.bf16.mxu0 0
        %888 = vmatpush1.bf16.msra.mxu0 0
        %889 = vmatprep.subr.bf16.mxu0 0
        %890 = vmatpush1.bf16.msra.mxu0 0
        %891 = vmatprep.subr.bf16.mxu0 0
        %892 = vmatpush1.bf16.msra.mxu0 0
        %893 = vmatprep.subr.bf16.mxu0 0
        %894 = vmatpush1.bf16.msra.mxu0 0
        %895 = vmatprep.subr.bf16.mxu0 0
        %896 = vmatpush1.bf16.msra.mxu0 0
        %897 = vmatprep.subr.bf16.mxu0 0
        %898 = vmatpush1.bf16.msra.mxu0 0
        %899 = vmatprep.subr.bf16.mxu0 0
        %900 = vmatpush1.bf16.msra.mxu0 0
        %901 = vmatprep.subr.bf16.mxu0 0
        %902 = vmatpush1.bf16.msra.mxu0 0
        %903 = vmatprep.subr.bf16.mxu0 0
        %904 = vmatpush1.bf16.msra.mxu0 0
        %905 = vmatprep.subr.bf16.mxu0 0
        %906 = vmatpush1.bf16.msra.mxu0 0
        %907 = vmatprep.subr.bf16.mxu0 0
        %908 = vmatpush1.bf16.msra.mxu0 0
        %909 = vmatprep.subr.bf16.mxu0 0
        %910 = vmatpush1.bf16.msra.mxu0 0
        %911 = vmatprep.subr.bf16.mxu0 0
        %912 = vmatpush1.bf16.msra.mxu0 0
        %913 = vmatprep.subr.bf16.mxu0 0
        %914 = vmatpush1.bf16.msra.mxu0 0
        %915 = vmatprep.mubr.bf16.mxu0 0
        %916 = vmatmul.mubr.bf16.gmra.mrb[0].mxu0 %v881
        %v917 = vpop.f32.mrb[0].mxu0
        %v918 = vadd.f32 0.0, %v917
        %v919 = vpop.f32.mrb[0].mxu0
        %v920 = vpop.f32.mrb[0].mxu0
        %v921 = vadd.f32 0.0, %v920
        %v922 = vpop.f32.mrb[0].mxu0
        %923 = vdwg.mxu0
        %v924 = vadd.f32 %v858, %v918
        %v925 = vadd.f32 %v859, %v921
        %s926 = scalar_lea.vmem %s2, 1
        %v927 = vld [vmem:[%s926] sm:$0x1]
        %v929 = vlaneseq
        %v930 = vshrl.u32 %v929, 7
        %v931 = vsub.s32 0, %v930
        %v932 = vrot.slane %v927, %v931
        %v934 = vadd.f32 %v924, %v932
        %v935 = vadd.f32 %v925, %v932
        %v936 = vmax.f32 %v934, 0.0
        %v937 = vmax.f32 %v935, 0.0
        %938 = vst.msk [vmem:[#allocation2 + $0x8] sm:$0xff] %vm255, %v936
        %939 = vst.msk [vmem:[#allocation2 + $0x10] sm:$0xff] %vm255, %v937
        %v940 = vld [vmem:[#allocation2 + $0x6] sm:$0xff]
        %v941 = vld [vmem:[#allocation2 + $0xe] sm:$0xff]
        %v942 = vpack.c.bf16 %v941, %v940
        %s943 = scalar_lea.vmem [#allocation5], 160
        %v944 = vld [vmem:[%s943] sm:$0xf]
        %v945 = vld [vmem:[%s943 + $0x4] sm:$0xf]
        %v946 = vld [vmem:[%s943 + $0x8] sm:$0xf]
        %v947 = vld [vmem:[%s943 + $0xc] sm:$0xf]
        %v948 = vld [vmem:[#allocation2 + $0x7] sm:$0xff]
        %v949 = vld [vmem:[#allocation2 + $0xf] sm:$0xff]
        %v950 = vpack.c.bf16 %v949, %v948
        %s951 = scalar_lea.vmem [#allocation5], 176
        %v952 = vld [vmem:[%s951] sm:$0xf]
        %v953 = vld [vmem:[%s951 + $0x4] sm:$0xf]
        %v954 = vld [vmem:[%s951 + $0x8] sm:$0xf]
        %v955 = vld [vmem:[%s951 + $0xc] sm:$0xf]
        %v960 = vunpack.c.l.b16 %v952
        %v961 = vunpack.c.l.b16 %v953
        %v962 = vunpack.c.l.b16 %v954
        %v963 = vunpack.c.l.b16 %v955
        %v964 = vpack.c.b16 %v961, %v960
        %v965 = vpack.c.b16 %v963, %v962
        %v969 = vsel %vm255, %v950, 0
        %971 = vmatprep.subr.bf16.mxu0 0
        %972 = vmatpush1.bf16.msra.mxu0 %v964
        %973 = vmatprep.subr.bf16.mxu0 0
        %974 = vmatpush1.bf16.msra.mxu0 %v965
        %975 = vmatprep.subr.bf16.mxu0 0
        %976 = vmatpush1.bf16.msra.mxu0 0
        %977 = vmatprep.subr.bf16.mxu0 0
        %978 = vmatpush1.bf16.msra.mxu0 0
        %979 = vmatprep.subr.bf16.mxu0 0
        %980 = vmatpush1.bf16.msra.mxu0 0
        %981 = vmatprep.subr.bf16.mxu0 0
        %982 = vmatpush1.bf16.msra.mxu0 0
        %983 = vmatprep.subr.bf16.mxu0 0
        %984 = vmatpush1.bf16.msra.mxu0 0
        %985 = vmatprep.subr.bf16.mxu0 0
        %986 = vmatpush1.bf16.msra.mxu0 0
        %987 = vmatprep.subr.bf16.mxu0 0
        %988 = vmatpush1.bf16.msra.mxu0 0
        %989 = vmatprep.subr.bf16.mxu0 0
        %990 = vmatpush1.bf16.msra.mxu0 0
        %991 = vmatprep.subr.bf16.mxu0 0
        %992 = vmatpush1.bf16.msra.mxu0 0
        %993 = vmatprep.subr.bf16.mxu0 0
        %994 = vmatpush1.bf16.msra.mxu0 0
        %995 = vmatprep.subr.bf16.mxu0 0
        %996 = vmatpush1.bf16.msra.mxu0 0
        %997 = vmatprep.subr.bf16.mxu0 0
        %998 = vmatpush1.bf16.msra.mxu0 0
        %999 = vmatprep.subr.bf16.mxu0 0
        %1000 = vmatpush1.bf16.msra.mxu0 0
        %1001 = vmatprep.subr.bf16.mxu0 0
        %1002 = vmatpush1.bf16.msra.mxu0 0
        %1003 = vmatprep.mubr.bf16.mxu0 0
        %1004 = vmatmul.mubr.bf16.gmra.mrb[0].mxu0 %v969
        %v1005 = vpop.f32.mrb[0].mxu0
        %v1006 = vadd.f32 0.0, %v1005
        %v1007 = vpop.f32.mrb[0].mxu0
        %v1008 = vpop.f32.mrb[0].mxu0
        %v1009 = vadd.f32 0.0, %v1008
        %v1010 = vpop.f32.mrb[0].mxu0
        %1011 = vdwg.mxu0
        %v1016 = vunpack.c.l.b16 %v944
        %v1017 = vunpack.c.l.b16 %v945
        %v1018 = vunpack.c.l.b16 %v946
        %v1019 = vunpack.c.l.b16 %v947
        %v1020 = vpack.c.b16 %v1017, %v1016
        %v1021 = vpack.c.b16 %v1019, %v1018
        %v1025 = vsel %vm255, %v942, 0
        %1027 = vmatprep.subr.bf16.mxu0 0
        %1028 = vmatpush1.bf16.msra.mxu0 %v1020
        %1029 = vmatprep.subr.bf16.mxu0 0
        %1030 = vmatpush1.bf16.msra.mxu0 %v1021
        %1031 = vmatprep.subr.bf16.mxu0 0
        %1032 = vmatpush1.bf16.msra.mxu0 0
        %1033 = vmatprep.subr.bf16.mxu0 0
        %1034 = vmatpush1.bf16.msra.mxu0 0
        %1035 = vmatprep.subr.bf16.mxu0 0
        %1036 = vmatpush1.bf16.msra.mxu0 0
        %1037 = vmatprep.subr.bf16.mxu0 0
        %1038 = vmatpush1.bf16.msra.mxu0 0
        %1039 = vmatprep.subr.bf16.mxu0 0
        %1040 = vmatpush1.bf16.msra.mxu0 0
        %1041 = vmatprep.subr.bf16.mxu0 0
        %1042 = vmatpush1.bf16.msra.mxu0 0
        %1043 = vmatprep.subr.bf16.mxu0 0
        %1044 = vmatpush1.bf16.msra.mxu0 0
        %1045 = vmatprep.subr.bf16.mxu0 0
        %1046 = vmatpush1.bf16.msra.mxu0 0
        %1047 = vmatprep.subr.bf16.mxu0 0
        %1048 = vmatpush1.bf16.msra.mxu0 0
        %1049 = vmatprep.subr.bf16.mxu0 0
        %1050 = vmatpush1.bf16.msra.mxu0 0
        %1051 = vmatprep.subr.bf16.mxu0 0
        %1052 = vmatpush1.bf16.msra.mxu0 0
        %1053 = vmatprep.subr.bf16.mxu0 0
        %1054 = vmatpush1.bf16.msra.mxu0 0
        %1055 = vmatprep.subr.bf16.mxu0 0
        %1056 = vmatpush1.bf16.msra.mxu0 0
        %1057 = vmatprep.subr.bf16.mxu0 0
        %1058 = vmatpush1.bf16.msra.mxu0 0
        %1059 = vmatprep.mubr.bf16.mxu0 0
        %1060 = vmatmul.mubr.bf16.gmra.mrb[0].mxu0 %v1025
        %v1061 = vpop.f32.mrb[0].mxu0
        %v1062 = vadd.f32 %v1006, %v1061
        %v1063 = vpop.f32.mrb[0].mxu0
        %v1064 = vpop.f32.mrb[0].mxu0
        %v1065 = vadd.f32 %v1009, %v1064
        %v1066 = vpop.f32.mrb[0].mxu0
        %1067 = vdwg.mxu0
        %v1068 = vld [vmem:[#allocation2 + $0x8] sm:$0xff]
        %v1069 = vld [vmem:[#allocation2 + $0x10] sm:$0xff]
        %v1070 = vpack.c.bf16 %v1069, %v1068
        %s1071 = scalar_lea.vmem [#allocation5], 192
        %v1072 = vld [vmem:[%s1071] sm:$0xf]
        %v1073 = vld [vmem:[%s1071 + $0x4] sm:$0xf]
        %v1074 = vld [vmem:[%s1071 + $0x8] sm:$0xf]
        %v1075 = vld [vmem:[%s1071 + $0xc] sm:$0xf]
        %v1080 = vunpack.c.l.b16 %v1072
        %v1081 = vunpack.c.l.b16 %v1073
        %v1082 = vunpack.c.l.b16 %v1074
        %v1083 = vunpack.c.l.b16 %v1075
        %v1084 = vpack.c.b16 %v1081, %v1080
        %v1085 = vpack.c.b16 %v1083, %v1082
        %v1089 = vsel %vm255, %v1070, 0
        %1091 = vmatprep.subr.bf16.mxu0 0
        %1092 = vmatpush1.bf16.msra.mxu0 %v1084
        %1093 = vmatprep.subr.bf16.mxu0 0
        %1094 = vmatpush1.bf16.msra.mxu0 %v1085
        %1095 = vmatprep.subr.bf16.mxu0 0
        %1096 = vmatpush1.bf16.msra.mxu0 0
        %1097 = vmatprep.subr.bf16.mxu0 0
        %1098 = vmatpush1.bf16.msra.mxu0 0
        %1099 = vmatprep.subr.bf16.mxu0 0
        %1100 = vmatpush1.bf16.msra.mxu0 0
        %1101 = vmatprep.subr.bf16.mxu0 0
        %1102 = vmatpush1.bf16.msra.mxu0 0
        %1103 = vmatprep.subr.bf16.mxu0 0
        %1104 = vmatpush1.bf16.msra.mxu0 0
        %1105 = vmatprep.subr.bf16.mxu0 0
        %1106 = vmatpush1.bf16.msra.mxu0 0
        %1107 = vmatprep.subr.bf16.mxu0 0
        %1108 = vmatpush1.bf16.msra.mxu0 0
        %1109 = vmatprep.subr.bf16.mxu0 0
        %1110 = vmatpush1.bf16.msra.mxu0 0
        %1111 = vmatprep.subr.bf16.mxu0 0
        %1112 = vmatpush1.bf16.msra.mxu0 0
        %1113 = vmatprep.subr.bf16.mxu0 0
        %1114 = vmatpush1.bf16.msra.mxu0 0
        %1115 = vmatprep.subr.bf16.mxu0 0
        %1116 = vmatpush1.bf16.msra.mxu0 0
        %1117 = vmatprep.subr.bf16.mxu0 0
        %1118 = vmatpush1.bf16.msra.mxu0 0
        %1119 = vmatprep.subr.bf16.mxu0 0
        %1120 = vmatpush1.bf16.msra.mxu0 0
        %1121 = vmatprep.subr.bf16.mxu0 0
        %1122 = vmatpush1.bf16.msra.mxu0 0
        %1123 = vmatprep.mubr.bf16.mxu0 0
        %1124 = vmatmul.mubr.bf16.gmra.mrb[0].mxu0 %v1089
        %v1125 = vpop.f32.mrb[0].mxu0
        %v1126 = vadd.f32 0.0, %v1125
        %v1127 = vpop.f32.mrb[0].mxu0
        %v1128 = vpop.f32.mrb[0].mxu0
        %v1129 = vadd.f32 0.0, %v1128
        %v1130 = vpop.f32.mrb[0].mxu0
        %1131 = vdwg.mxu0
        %v1132 = vadd.f32 %v1062, %v1126
        %v1133 = vadd.f32 %v1065, %v1129
        %v1134 = vld [vmem:[#allocation2 + $0x9] sm:$0xff]
        %v1135 = vld [vmem:[#allocation2 + $0x11] sm:$0xff]
        %v1136 = vpack.c.bf16 %v1135, %v1134
        %s1137 = scalar_lea.vmem [#allocation5], 208
        %v1138 = vld [vmem:[%s1137] sm:$0xf]
        %v1139 = vld [vmem:[%s1137 + $0x4] sm:$0xf]
        %v1140 = vld [vmem:[%s1137 + $0x8] sm:$0xf]
        %v1141 = vld [vmem:[%s1137 + $0xc] sm:$0xf]
        %v1146 = vunpack.c.l.b16 %v1138
        %v1147 = vunpack.c.l.b16 %v1139
        %v1148 = vunpack.c.l.b16 %v1140
        %v1149 = vunpack.c.l.b16 %v1141
        %v1150 = vpack.c.b16 %v1147, %v1146
        %v1151 = vpack.c.b16 %v1149, %v1148
        %v1155 = vsel %vm255, %v1136, 0
        %1157 = vmatprep.subr.bf16.mxu0 0
        %1158 = vmatpush1.bf16.msra.mxu0 %v1150
        %1159 = vmatprep.subr.bf16.mxu0 0
        %1160 = vmatpush1.bf16.msra.mxu0 %v1151
        %1161 = vmatprep.subr.bf16.mxu0 0
        %1162 = vmatpush1.bf16.msra.mxu0 0
        %1163 = vmatprep.subr.bf16.mxu0 0
        %1164 = vmatpush1.bf16.msra.mxu0 0
        %1165 = vmatprep.subr.bf16.mxu0 0
        %1166 = vmatpush1.bf16.msra.mxu0 0
        %1167 = vmatprep.subr.bf16.mxu0 0
        %1168 = vmatpush1.bf16.msra.mxu0 0
        %1169 = vmatprep.subr.bf16.mxu0 0
        %1170 = vmatpush1.bf16.msra.mxu0 0
        %1171 = vmatprep.subr.bf16.mxu0 0
        %1172 = vmatpush1.bf16.msra.mxu0 0
        %1173 = vmatprep.subr.bf16.mxu0 0
        %1174 = vmatpush1.bf16.msra.mxu0 0
        %1175 = vmatprep.subr.bf16.mxu0 0
        %1176 = vmatpush1.bf16.msra.mxu0 0
        %1177 = vmatprep.subr.bf16.mxu0 0
        %1178 = vmatpush1.bf16.msra.mxu0 0
        %1179 = vmatprep.subr.bf16.mxu0 0
        %1180 = vmatpush1.bf16.msra.mxu0 0
        %1181 = vmatprep.subr.bf16.mxu0 0
        %1182 = vmatpush1.bf16.msra.mxu0 0
        %1183 = vmatprep.subr.bf16.mxu0 0
        %1184 = vmatpush1.bf16.msra.mxu0 0
        %1185 = vmatprep.subr.bf16.mxu0 0
        %1186 = vmatpush1.bf16.msra.mxu0 0
        %1187 = vmatprep.subr.bf16.mxu0 0
        %1188 = vmatpush1.bf16.msra.mxu0 0
        %1189 = vmatprep.mubr.bf16.mxu0 0
        %1190 = vmatmul.mubr.bf16.gmra.mrb[0].mxu0 %v1155
        %v1191 = vpop.f32.mrb[0].mxu0
        %v1192 = vadd.f32 0.0, %v1191
        %v1193 = vpop.f32.mrb[0].mxu0
        %v1194 = vpop.f32.mrb[0].mxu0
        %v1195 = vadd.f32 0.0, %v1194
        %v1196 = vpop.f32.mrb[0].mxu0
        %1197 = vdwg.mxu0
        %v1198 = vadd.f32 %v1132, %v1192
        %v1199 = vadd.f32 %v1133, %v1195
        %v1200 = vld [vmem:[#allocation2 + $0xa] sm:$0xff]
        %v1201 = vld [vmem:[#allocation2 + $0x12] sm:$0xff]
        %v1202 = vpack.c.bf16 %v1201, %v1200
        %s1203 = scalar_lea.vmem [#allocation5], 224
        %v1204 = vld [vmem:[%s1203] sm:$0xf]
        %v1205 = vld [vmem:[%s1203 + $0x4] sm:$0xf]
        %v1206 = vld [vmem:[%s1203 + $0x8] sm:$0xf]
        %v1207 = vld [vmem:[%s1203 + $0xc] sm:$0xf]
        %v1212 = vunpack.c.l.b16 %v1204
        %v1213 = vunpack.c.l.b16 %v1205
        %v1214 = vunpack.c.l.b16 %v1206
        %v1215 = vunpack.c.l.b16 %v1207
        %v1216 = vpack.c.b16 %v1213, %v1212
        %v1217 = vpack.c.b16 %v1215, %v1214
        %v1221 = vsel %vm255, %v1202, 0
        %1223 = vmatprep.subr.bf16.mxu0 0
        %1224 = vmatpush1.bf16.msra.mxu0 %v1216
        %1225 = vmatprep.subr.bf16.mxu0 0
        %1226 = vmatpush1.bf16.msra.mxu0 %v1217
        %1227 = vmatprep.subr.bf16.mxu0 0
        %1228 = vmatpush1.bf16.msra.mxu0 0
        %1229 = vmatprep.subr.bf16.mxu0 0
        %1230 = vmatpush1.bf16.msra.mxu0 0
        %1231 = vmatprep.subr.bf16.mxu0 0
        %1232 = vmatpush1.bf16.msra.mxu0 0
        %1233 = vmatprep.subr.bf16.mxu0 0
        %1234 = vmatpush1.bf16.msra.mxu0 0
        %1235 = vmatprep.subr.bf16.mxu0 0
        %1236 = vmatpush1.bf16.msra.mxu0 0
        %1237 = vmatprep.subr.bf16.mxu0 0
        %1238 = vmatpush1.bf16.msra.mxu0 0
        %1239 = vmatprep.subr.bf16.mxu0 0
        %1240 = vmatpush1.bf16.msra.mxu0 0
        %1241 = vmatprep.subr.bf16.mxu0 0
        %1242 = vmatpush1.bf16.msra.mxu0 0
        %1243 = vmatprep.subr.bf16.mxu0 0
        %1244 = vmatpush1.bf16.msra.mxu0 0
        %1245 = vmatprep.subr.bf16.mxu0 0
        %1246 = vmatpush1.bf16.msra.mxu0 0
        %1247 = vmatprep.subr.bf16.mxu0 0
        %1248 = vmatpush1.bf16.msra.mxu0 0
        %1249 = vmatprep.subr.bf16.mxu0 0
        %1250 = vmatpush1.bf16.msra.mxu0 0
        %1251 = vmatprep.subr.bf16.mxu0 0
        %1252 = vmatpush1.bf16.msra.mxu0 0
        %1253 = vmatprep.subr.bf16.mxu0 0
        %1254 = vmatpush1.bf16.msra.mxu0 0
        %1255 = vmatprep.mubr.bf16.mxu0 0
        %1256 = vmatmul.mubr.bf16.gmra.mrb[0].mxu0 %v1221
        %v1257 = vpop.f32.mrb[0].mxu0
        %v1258 = vadd.f32 0.0, %v1257
        %v1259 = vpop.f32.mrb[0].mxu0
        %v1260 = vpop.f32.mrb[0].mxu0
        %v1261 = vadd.f32 0.0, %v1260
        %v1262 = vpop.f32.mrb[0].mxu0
        %1263 = vdwg.mxu0
        %v1264 = vadd.f32 %v1198, %v1258
        %v1265 = vadd.f32 %v1199, %v1261
        %s1266 = scalar_lea.vmem %s2, 2
        %v1267 = vld [vmem:[%s1266] sm:$0x1]
        %v1269 = vlaneseq
        %v1270 = vshrl.u32 %v1269, 7
        %v1271 = vsub.s32 0, %v1270
        %v1272 = vrot.slane %v1267, %v1271
        %v1274 = vadd.f32 %v1264, %v1272
        %v1275 = vadd.f32 %v1265, %v1272
        %v1276 = vmax.f32 %v1274, 0.0
        %v1277 = vmax.f32 %v1275, 0.0
        %1278 = vst.msk [vmem:[#allocation2 + $0x8] sm:$0xff] %vm255, %v1276
        %1279 = vst.msk [vmem:[#allocation2 + $0x10] sm:$0xff] %vm255, %v1277
        %v1280 = vpack.c.bf16 %v1277, %v1276
        %v1281 = vld [vmem:[%s3] sm:$0xf]
        %v1282 = vld [vmem:[%s3 + $0x4] sm:$0xf]
        %v1283 = vld [vmem:[%s3 + $0x8] sm:$0xf]
        %v1284 = vld [vmem:[%s3 + $0xc] sm:$0xf]
        %v1285 = vld [vmem:[%s4] sm:$0x1]
        %v1287 = vlaneseq
        %v1288 = vshrl.u32 %v1287, 7
        %v1289 = vsub.s32 0, %v1288
        %v1290 = vrot.slane %v1285, %v1289
        %v1296 = vunpack.c.l.b16 %v1281
        %v1297 = vunpack.c.l.b16 %v1282
        %v1298 = vunpack.c.l.b16 %v1283
        %v1299 = vunpack.c.l.b16 %v1284
        %v1300 = vpack.c.b16 %v1297, %v1296
        %v1301 = vpack.c.b16 %v1299, %v1298
        %v1305 = vsel %vm255, %v1280, 0
        %1307 = vmatprep.subr.bf16.mxu0 0
        %1308 = vmatpush1.bf16.msra.mxu0 %v1300
        %1309 = vmatprep.subr.bf16.mxu0 0
        %1310 = vmatpush1.bf16.msra.mxu0 %v1301
        %1311 = vmatprep.subr.bf16.mxu0 0
        %1312 = vmatpush1.bf16.msra.mxu0 0
        %1313 = vmatprep.subr.bf16.mxu0 0
        %1314 = vmatpush1.bf16.msra.mxu0 0
        %1315 = vmatprep.subr.bf16.mxu0 0
        %1316 = vmatpush1.bf16.msra.mxu0 0
        %1317 = vmatprep.subr.bf16.mxu0 0
        %1318 = vmatpush1.bf16.msra.mxu0 0
        %1319 = vmatprep.subr.bf16.mxu0 0
        %1320 = vmatpush1.bf16.msra.mxu0 0
        %1321 = vmatprep.subr.bf16.mxu0 0
        %1322 = vmatpush1.bf16.msra.mxu0 0
        %1323 = vmatprep.subr.bf16.mxu0 0
        %1324 = vmatpush1.bf16.msra.mxu0 0
        %1325 = vmatprep.subr.bf16.mxu0 0
        %1326 = vmatpush1.bf16.msra.mxu0 0
        %1327 = vmatprep.subr.bf16.mxu0 0
        %1328 = vmatpush1.bf16.msra.mxu0 0
        %1329 = vmatprep.subr.bf16.mxu0 0
        %1330 = vmatpush1.bf16.msra.mxu0 0
        %1331 = vmatprep.subr.bf16.mxu0 0
        %1332 = vmatpush1.bf16.msra.mxu0 0
        %1333 = vmatprep.subr.bf16.mxu0 0
        %1334 = vmatpush1.bf16.msra.mxu0 0
        %1335 = vmatprep.subr.bf16.mxu0 0
        %1336 = vmatpush1.bf16.msra.mxu0 0
        %1337 = vmatprep.subr.bf16.mxu0 0
        %1338 = vmatpush1.bf16.msra.mxu0 0
        %1339 = vmatprep.mubr.bf16.mxu0 0
        %1340 = vmatmul.mubr.bf16.gmra.mrb[0].mxu0 %v1305
        %v1341 = vpop.f32.mrb[0].mxu0
        %v1342 = vadd.f32 %v1290, %v1341
        %v1343 = vpop.f32.mrb[0].mxu0
        %v1344 = vpop.f32.mrb[0].mxu0
        %v1345 = vadd.f32 %v1290, %v1344
        %v1346 = vpop.f32.mrb[0].mxu0
        %1347 = vdwg.mxu0
        %v1348 = vpack.c.bf16 %v1345, %v1342
        %v1350 = vunpack.c.l.b16 %v1348
        %v1351 = vunpack.c.h.b16 %v1348
        %v1352 = vpack.c.b16 %v1350, %v1350
        %v1353 = vpack.c.b16 %v1351, %v1351
        %1356 = vst [vmem:[%s253] sm:$0xf] %v1352
        %1357 = vst [vmem:[%s253 + $0x4] sm:$0xf] %v1353
        %s1358 = sand.u32 %s138, 1
        %s1359 = sand.u32 %s138, 1
        %s1360 = smul.addr %s1359, 8
        %s1361 = scalar_lea.vmem [#allocation7], %s1360
        // Predicated region
        $region49: #{encoder_forward.2} parent=39 // pred_check
          %p1362 = pneg %p148
        $region50: #{encoder_forward.2} parent=39 // pred_check_branch
          %1364 = sbr.rel (%p1362) target = $region52
        $region51: #{encoder_forward.2} parent=39 // pred_region
          %s1365 = smul.addr %s20, 4
          %s1366 = scalar_lea.vmem %s5, %s1365
          // Predicated region
          $region53: #{encoder_forward.2} parent=51 // pred_check
            _
          $region54: #{encoder_forward.2} parent=51 // pred_check_branch
            %1368 = sbr.rel (0) target = $region56
          $region55: #{encoder_forward.2} parent=51 // pred_region
            // Predicated region
            $region57: #{encoder_forward.2} parent=55 // pred_check
              _
            $region58: #{encoder_forward.2} parent=55 // pred_check_branch
              %1370 = sbr.rel target = $region60
            $region59: #{encoder_forward.2} parent=55 // pred_region
              // Predicated region
              $region72: #{encoder_forward.2} parent=59 // pred_check
                _
              $region73: #{encoder_forward.2} parent=59 // pred_check_branch
                %1387 = sbr.rel (0) target = $region75
              $region74: #{encoder_forward.2} parent=59 // pred_region
                loop: start=0, step=1, limit=1
                $region76: #{encoder_forward.2} parent=74 // loop_pre_header
                  _
                $region77: #{encoder_forward.2} parent=74 // loop_header
                  %s1389 = sphi 0, %s1393
                  %p1390 = scmp.ge.s32.totalorder %s1389, 1
                  %s1394 = sphi %s1361, %s1361
                  %s1395 = sphi %s1366, %s1366
                $region78: #{encoder_forward.2} parent=74 // loop_header_branch
                  %1392 = sbr.rel (%p1390) target = $region82
                $region79: #{encoder_forward.2} parent=74 // loop_body
                  _
                $region80: #{encoder_forward.2} parent=74 // loop_footer
                  %s1393 = sadd.s32 1, %s1389
                $region81: #{encoder_forward.2} parent=74 // loop_footer_branch
                  %1388 = sbr.rel target = $region77
                $region82: #{encoder_forward.2} parent=74 // loop_exit
                  _
                loop: start=0, step=1, limit=1
                $region83: #{encoder_forward.2} parent=74 // loop_pre_header
                  _
                $region84: #{encoder_forward.2} parent=74 // loop_header
                  %s1398 = sphi 0, %s1402
                  %p1399 = scmp.ge.s32.totalorder %s1398, 1
                  %s1403 = sphi %s1361, %s1361
                  %s1404 = sphi %s1366, %s1366
                $region85: #{encoder_forward.2} parent=74 // loop_header_branch
                  %1401 = sbr.rel (%p1399) target = $region89
                $region86: #{encoder_forward.2} parent=74 // loop_body
                  %v1405 = vld [vmem:[%s1403] sm:$0xf]
                  %1406 = vst [vmem:[%s1404] sm:$0xf] %v1405
                  %v1407 = vld [vmem:[%s1403 + $0x4] sm:$0xf]
                  %1408 = vst [vmem:[%s1404 + $0x8] sm:$0xf] %v1407
                $region87: #{encoder_forward.2} parent=74 // loop_footer
                  %s1402 = sadd.s32 1, %s1398
                $region88: #{encoder_forward.2} parent=74 // loop_footer_branch
                  %1397 = sbr.rel target = $region84
                $region89: #{encoder_forward.2} parent=74 // loop_exit
                  _
              $region75: #{encoder_forward.2} parent=59 // pred_fallthru
                _
            $region60: #{encoder_forward.2} parent=55 // pred_fallthru
              _
            // Predicated region
            $region61: #{encoder_forward.2} parent=55 // pred_check
              _
            $region62: #{encoder_forward.2} parent=55 // pred_check_branch
              %1372 = sbr.rel (0) target = $region64
            $region63: #{encoder_forward.2} parent=55 // pred_region
              loop: start=0, step=1, limit=1
              $region65: #{encoder_forward.2} parent=63 // loop_pre_header
                _
              $region66: #{encoder_forward.2} parent=63 // loop_header
                %s1375 = sphi 0, %s1379
                %p1376 = scmp.ge.s32.totalorder %s1375, 1
                %s1380 = sphi %s1361, %s1361
                %s1381 = sphi %s1366, %s1366
              $region67: #{encoder_forward.2} parent=63 // loop_header_branch
                %1378 = sbr.rel (%p1376) target = $region71
              $region68: #{encoder_forward.2} parent=63 // loop_body
                %v1382 = vld [vmem:[%s1380] sm:$0xf]
                %1383 = vst [vmem:[%s1381] sm:$0xf] %v1382
                %v1384 = vld [vmem:[%s1380 + $0x4] sm:$0xf]
                %1385 = vst [vmem:[%s1381 + $0x8] sm:$0xf] %v1384
              $region69: #{encoder_forward.2} parent=63 // loop_footer
                %s1379 = sadd.s32 1, %s1375
              $region70: #{encoder_forward.2} parent=63 // loop_footer_branch
                %1374 = sbr.rel target = $region66
              $region71: #{encoder_forward.2} parent=63 // loop_exit
                _
            $region64: #{encoder_forward.2} parent=55 // pred_fallthru
              _
          $region56: #{encoder_forward.2} parent=51 // pred_fallthru
            _
          %1409 = vnop
        $region52: #{encoder_forward.2} parent=39 // pred_fallthru
          _
      $region40: #{encoder_forward.2} parent=5 // pred_fallthru
        _
      %p1410 = scmp.le.s32.totalorder 2, %s15
      // Predicated region
      $region90: #{encoder_forward.2} parent=5 // pred_check
        %p1411 = pneg %p1410
      $region91: #{encoder_forward.2} parent=5 // pred_check_branch
        %1413 = sbr.rel (%p1411) target = $region93
      $region92: #{encoder_forward.2} parent=5 // pred_region
        %s1414 = ssub.s32 %s15, 2
        // Predicated region
        $region94: #{encoder_forward.2} parent=92 // pred_check
          %p1415 = pneg %p154
        $region95: #{encoder_forward.2} parent=92 // pred_check_branch
          %1417 = sbr.rel (%p1415) target = $region97
        $region96: #{encoder_forward.2} parent=92 // pred_region
          %s1418 = sand.u32 %s139, 1
          %s1419 = sand.u32 %s139, 1
          %s1420 = smul.addr %s1419, 8
          %s1421 = scalar_lea.vmem [#allocation7], %s1420
        $region97: #{encoder_forward.2} parent=92 // pred_fallthru
          _
      $region93: #{encoder_forward.2} parent=5 // pred_fallthru
        _
    $region6: #{encoder_forward.2} parent=1 // loop_footer
      %s19 = sadd.s32 1, %s15
    $region7: #{encoder_forward.2} parent=1 // loop_footer_branch
      %14 = sbr.rel target = $region3
    $region8: #{encoder_forward.2} parent=1 // loop_exit
      _
    %1422 = vsyncpa [#allocation4], 1
    %s1423 = scalar_lea.sflag [#allocation4], 1
    %1424 = vsyncpa %s1423, 1
    %1425 = vsyncpa [#allocation6], 1

</llo_original>
